<compile_context>
chip_gen: v7x
topology: tpu7x:2x2x1
jax: 0.10.0
libtpu: 0.0.40
codegen_flags: <defaults>
</compile_context>

<pallas_src>
import jax
import jax.numpy as jnp
from jax.experimental import pallas as pl
from jax.experimental.pallas import tpu as pltpu


_LANE = 128
_SUBLANE = 8
_TILE_CAP = 2048          # measured roofline plateau is ~512-1024 lanes
_SMALL_BYTES = 1 << 20    # below this, fused XLA beats kernel-launch overhead


def _round_up(v, m):
    return ((v + m - 1) // m) * m


def _jnp_softmax_dim0(x):
    num = jnp.exp(x)
    return num / jnp.sum(num, axis=0, keepdims=True)


def _vmem_budgets():
    """Generation-aware VMEM budgets.

    128 MiB parts (v5e/v6e): ~56 MiB block budget, ~104 MiB scoped limit.
     64 MiB part  (v7x)    : ~24 MiB block budget, ~40  MiB scoped limit.
    """
    try:
        cap = int(pltpu.get_tpu_info().vmem_capacity_bytes)
    except Exception:
        cap = 64 * 1024 * 1024  # conservative (v7x-sized) fallback
    block_budget = max(16 << 20, cap // 2 - (8 << 20))
    vmem_limit = max(block_budget + (8 << 20), cap - (24 << 20))
    return block_budget, vmem_limit


# ---------------------------------------------------------------------------
# Single-pass path: the full column block (N, tile_d) fits in VMEM.
# ---------------------------------------------------------------------------
def _softmax_dim0_kernel(x_ref, o_ref):
    # One (N, tile_d) block resident in VMEM; reduce over the sublane axis.
    # exp() runs on the EUP; compute in f32 in one expression so only the f32
    # `num` intermediate is live.  One reciprocal per column, then a VPU
    # broadcast-multiply (instead of N*tile_d divides).
    num = jnp.exp(x_ref[...].astype(jnp.float32))
    inv = 1.0 / jnp.sum(num, axis=0, keepdims=True)      # (1, tile_d)
    o_ref[...] = (num * inv).astype(o_ref.dtype)


def _choose_tile_d(n_rows, d, dtype_size, budget):
    """Largest 128-multiple lane tile fitting the VMEM budget; splits only
    when every tile stays >= 512 lanes, preferring even step counts."""
    d128 = _round_up(d, _LANE)
    # Per lane column: 2x double-buffered input + 2x double-buffered output
    # blocks (input dtype) + ~2 full-block f32 intermediates.
    bytes_per_lane = n_rows * (4 * dtype_size + 8)
    cap = (budget // bytes_per_lane) // _LANE * _LANE
    if cap < _LANE:
        return 0  # even a 128-lane full-column block does not fit -> two-pass
    tile = min(cap, _TILE_CAP, d128)
    steps = pl.cdiv(d128, tile)
    if steps == 1:
        # Single tile covers everything.  A 2-way split keeps both v7x
        # TensorCores busy; only worth it while each half stays >= 512 lanes
        # (on single-TC v5e/v6e the split is essentially neutral).
        if d128 >= 2 * 512:
            tile = _round_up(pl.cdiv(d128, 2), _LANE)
        return tile
    # Multi-step grid: prefer an even step count (v7x's two TCs) while keeping
    # tiles >= 512 lanes.
    if steps % 2 == 1:
        t2 = _round_up(pl.cdiv(d128, steps + 1), _LANE)
        if t2 >= 512 and pl.cdiv(d128, t2) % 2 == 0:
            tile = t2
    return tile


# ---------------------------------------------------------------------------
# Two-pass tall-N path: full column does not fit VMEM.
#   pass 1: per-column sum of exp(x)  (grid (d parallel, n arbitrary))
#   pass 2: exp(x) * (1 / colsum)     (grid (d parallel, n parallel))
# Three HBM passes total, lane-dense tiles throughout.
# ---------------------------------------------------------------------------
def _softmax_two_pass(x2, tile_n, tile_d, vmem_limit):
    n_rows, d = x2.shape
    d_steps = pl.cdiv(d, tile_d)
    n_steps = pl.cdiv(n_rows, tile_n)

    def colsum_kernel(x_ref, s_ref):
        ni = pl.program_id(1)

        @pl.when(ni == 0)
        def _():
            s_ref[...] = jnp.zeros_like(s_ref)

        num = jnp.exp(x_ref[...].astype(jnp.float32))
        # Mask rows past n_rows in the (single) partial edge block: garbage
        # there must not pollute the column sums.
        row = jax.lax.broadcasted_iota(jnp.int32, x_ref.shape, 0) + ni * tile_n
        num = jnp.where(row < n_rows, num, 0.0)
        s_ref[...] += jnp.sum(num, axis=0, keepdims=True)

    sums = pl.pallas_call(
        colsum_kernel,
        out_shape=jax.ShapeDtypeStruct((1, d), jnp.float32),
        grid=(d_steps, n_steps),
        in_specs=[pl.BlockSpec((tile_n, tile_d), lambda j, i: (i, j))],
        out_specs=pl.BlockSpec((1, tile_d), lambda j, i: (0, j)),
        compiler_params=pltpu.CompilerParams(
            dimension_semantics=("parallel", "arbitrary"),
            vmem_limit_bytes=vmem_limit,
        ),
    )(x2)

    def normalize_kernel(x_ref, s_ref, o_ref):
        inv = 1.0 / s_ref[...]                            # (1, tile_d)
        o_ref[...] = (jnp.exp(x_ref[...].astype(jnp.float32)) * inv).astype(
            o_ref.dtype)

    return pl.pallas_call(
        normalize_kernel,
        out_shape=jax.ShapeDtypeStruct((n_rows, d), x2.dtype),
        grid=(d_steps, n_steps),
        in_specs=[pl.BlockSpec((tile_n, tile_d), lambda j, i: (i, j)),
                  pl.BlockSpec((1, tile_d), lambda j, i: (0, j))],
        out_specs=pl.BlockSpec((tile_n, tile_d), lambda j, i: (i, j)),
        compiler_params=pltpu.CompilerParams(
            dimension_semantics=("parallel", "parallel"),
            vmem_limit_bytes=vmem_limit,
        ),
    )(x2, sums)


def _tall_tiles(n_rows, d, dtype_size, budget):
    d128 = _round_up(d, _LANE)
    tile_d = min(512, d128)
    per_cell = 4 * dtype_size + 8
    tile_n = (budget // (tile_d * per_cell)) // _SUBLANE * _SUBLANE
    while tile_n < _SUBLANE and tile_d > _LANE:
        tile_d //= 2                                      # stays a 128 multiple
        tile_n = (budget // (tile_d * per_cell)) // _SUBLANE * _SUBLANE
    tile_n = max(_SUBLANE, min(tile_n, _round_up(n_rows, _SUBLANE), 2048))
    return tile_n, tile_d


# ---------------------------------------------------------------------------
# Public wrapper: matches MySoftmaxt.forward (softmax over dim 0).
# ---------------------------------------------------------------------------
def my_softmaxt(x):
    orig_shape = x.shape

    if x.ndim == 1:
        # Lane width 1 is pathological on TPU (masked stores, ~1/1024 vreg
        # utilization); plain XLA is the right tool for the degenerate path.
        return _jnp_softmax_dim0(x)

    x2 = x if x.ndim == 2 else x.reshape(x.shape[0], -1)
    n_rows, d = x2.shape
    dtype_size = jnp.dtype(x2.dtype).itemsize

    # Tiny-input fast path: launch overhead dominates below ~1 MiB / 128 lanes.
    if d < _LANE or n_rows * d * dtype_size < _SMALL_BYTES:
        return _jnp_softmax_dim0(x)

    block_budget, vmem_limit = _vmem_budgets()
    tile_d = _choose_tile_d(n_rows, d, dtype_size, block_budget)

    if tile_d == 0:
        # Too tall for a full-column block: two-pass kernel (3 HBM passes).
        tile_n, td = _tall_tiles(n_rows, d, dtype_size, block_budget)
        out2 = _softmax_two_pass(x2, tile_n, td, vmem_limit)
        return out2.reshape(orig_shape)

    grid = (pl.cdiv(d, tile_d),)
    cost = pl.CostEstimate(
        flops=2 * n_rows * d,
        transcendentals=n_rows * d,
        bytes_accessed=2 * n_rows * d * dtype_size,
    )

    out2 = pl.pallas_call(
        _softmax_dim0_kernel,
        out_shape=jax.ShapeDtypeStruct((n_rows, d), x2.dtype),
        grid=grid,
        in_specs=[pl.BlockSpec((n_rows, tile_d), lambda j: (0, j))],
        out_specs=pl.BlockSpec((n_rows, tile_d), lambda j: (0, j)),
        compiler_params=pltpu.CompilerParams(
            dimension_semantics=("parallel",),
            vmem_limit_bytes=vmem_limit,
        ),
        cost_estimate=cost,
    )(x2)

    return out2.reshape(orig_shape)


if __name__ == "__main__":
    key = jax.random.PRNGKey(0)
    k1, k2, k3, k4, k5 = jax.random.split(key, 5)

    # Primary shape consistent with the module: (seq=8, hidden=32), softmax
    # over dim 0 (the sequence axis).  Goes through the tiny-input fast path.
    x = jax.random.normal(k1, (8, 32), dtype=jnp.float32)
    out = jax.block_until_ready(my_softmaxt(x))
    ref = _jnp_softmax_dim0(x)
    assert out.shape == x.shape
    assert jnp.allclose(out, ref, atol=1e-5, rtol=1e-5), "mismatch (8,32)"
    assert jnp.allclose(jnp.sum(out, axis=0), jnp.ones((32,), jnp.float32),
                        atol=1e-5)

    # Pallas single-step path, D an exact multiple of 128.
    a = jax.random.normal(k2, (512, 640), dtype=jnp.float32)
    out_a = jax.block_until_ready(my_softmaxt(a))
    assert jnp.allclose(out_a, _jnp_softmax_dim0(a), atol=1e-5, rtol=1e-5), \
        "mismatch (512,640)"

    # Pallas path with a masked partial edge block (no jnp.pad round trip).
    b = jax.random.normal(k3, (512, 520), dtype=jnp.float32)
    out_b = jax.block_until_ready(my_softmaxt(b))
    assert out_b.shape == b.shape
    assert jnp.allclose(out_b, _jnp_softmax_dim0(b), atol=1e-5, rtol=1e-5), \
        "mismatch (512,520)"

    # Multi-step grid with a partial edge block.
    c = jax.random.normal(k4, (256, 2304), dtype=jnp.float32)
    out_c = jax.block_until_ready(my_softmaxt(c))
    assert jnp.allclose(out_c, _jnp_softmax_dim0(c), atol=1e-5, rtol=1e-5), \
        "mismatch (256,2304)"

    # Exercise the two-pass tall-N kernel directly at a small shape with tiny
    # tiles (covers both the row-masked and lane-masked edge blocks).
    t = jax.random.normal(k5, (72, 264), dtype=jnp.float32)
    out_t = jax.block_until_ready(
        _softmax_two_pass(t, tile_n=16, tile_d=128, vmem_limit=48 * 1024 * 1024))
    assert jnp.allclose(out_t, _jnp_softmax_dim0(t), atol=1e-5, rtol=1e-5), \
        "mismatch two-pass (72,264)"

    print("KERNEL_OK")
</pallas_src>

<mosaic_0001>
module attributes {stable_mosaic.version = 11 : i64} {
  func.func @_softmax_dim0_kernel(%arg0: i32, %arg1: memref<512x640xf32, #tpu.memory_space<vmem>>, %arg2: memref<512x640xf32, #tpu.memory_space<vmem>>) attributes {dimension_semantics = [#tpu.dimension_semantics<parallel>], iteration_bounds = array<i64: 1>, scalar_prefetch = 0 : i64, scratch_operands = 0 : i64, tpu.core_type = #tpu.core_type<tc>, window_params = [{transform_indices = @transform_0, window_bounds = array<i64: 512, 640>}, {transform_indices = @transform_1, window_bounds = array<i64: 512, 640>}]} {
    %c0 = arith.constant 0 : index
    %c0_0 = arith.constant 0 : index
    %0 = vector.load %arg1[%c0, %c0_0] : memref<512x640xf32, #tpu.memory_space<vmem>>, vector<512x640xf32>
    %1 = math.exp %0 : vector<512x640xf32>
    %cst = arith.constant dense<0.000000e+00> : vector<640xf32>
    %2 = vector.multi_reduction <add>, %1, %cst [0] : vector<512x640xf32> to vector<640xf32>
    %3 = vector.shape_cast %2 : vector<640xf32> to vector<1x640xf32>
    %cst_1 = arith.constant 1.000000e+00 : f32
    %4 = vector.broadcast %cst_1 : f32 to vector<1x640xf32>
    %5 = arith.divf %4, %3 : vector<1x640xf32>
    %6 = vector.broadcast %5 : vector<1x640xf32> to vector<512x640xf32>
    %7 = arith.mulf %1, %6 : vector<512x640xf32>
    %c0_2 = arith.constant 0 : index
    %c0_3 = arith.constant 0 : index
    %8 = vector.load %arg2[%c0_2, %c0_3] : memref<512x640xf32, #tpu.memory_space<vmem>>, vector<512x640xf32>
    tpu.vector_store %arg2[%c0_2, %c0_3], %7 {strides = array<i32>} : memref<512x640xf32, #tpu.memory_space<vmem>>, vector<512x640xf32>,
    return
  }
  func.func @transform_0(%arg0: i32) -> (i32, i32) {
    %c0_i32 = arith.constant 0 : i32
    %c0_i32_0 = arith.constant 0 : i32
    return %c0_i32, %arg0 : i32, i32
  }
  func.func @transform_1(%arg0: i32) -> (i32, i32) {
    %c0_i32 = arith.constant 0 : i32
    %c0_i32_0 = arith.constant 0 : i32
    return %c0_i32, %arg0 : i32, i32
  }
}

</mosaic_0001>

<llo_original>
// kernel: tpu_custom_call.1
$region0: #{tpu_custom_call.1}
  #allocation0 [shape = 'u32[]', space=smem, size = 0x4, offset = 0x4, fixed_abs, tag = 'smem constant byte address 0x4 - core index']
  #allocation1 [shape = 'u32[144,128]{1,0:T(1,128)}', space=vmem, size = 0x12000, scoped, tag = 'internal scratch']
  %s0 = inlined_call_operand.hbm [shape: f32[512,640], index: 0, kind: input, shape index: {}]
  %s1 = inlined_call_operand.hbm [shape: f32[512,640], index: 1, kind: output, shape index: {}]
  %s2 = sld [smem:[#allocation0]]
  $region18: #{tpu_custom_call.1} parent=0
    _
  %s4 = ssub.s32 1, %s2
  %s5 = scalar_select 0, %s4, %s2
  $region1: #{tpu_custom_call.1} parent=0
    #allocation2 [shape = 'u8[1310720]{0}', space=vmem, size = 0x140000, scoped, tag = 'input window, operand 0, single buffered']
    #allocation3 [shape = 's32[1]{0}', space=sflag, size = 0x4, scoped, tag = 'scoped memory for tpu_custom_call.1']
    #allocation4 [shape = 's32[1]{0}', space=sflag, size = 0x4, scoped, tag = 'scoped memory for tpu_custom_call.1']
    #allocation5 [shape = 'u8[1310720]{0}', space=vmem, size = 0x140000, scoped, tag = 'output window, operand 0, single buffered']
    %6 = vsyncpa [#allocation3], 0
    %7 = vsyncpa [#allocation4], 0
    // Predicated region
    $region2: #{tpu_custom_call.1} parent=1 // pred_check
      _
    $region3: #{tpu_custom_call.1} parent=1 // pred_check_branch
      %9 = sbr.rel (0) target = $region5
    $region4: #{tpu_custom_call.1} parent=1 // pred_region
      %s11 = ssub.s32 40960, 40960
      %12 = vsyncadd [#allocation3], %s11
      %s13 = sshll.u32 [#allocation2], 4
      %s14 = int_to_ptr.vmem [resolvable:$true] %s13
      %19 = dma.hbm_to_vmem [thread:$0]  %s0, 40960, %s14, [#allocation3], 640, 640, 40
    $region5: #{tpu_custom_call.1} parent=1 // pred_fallthru
      _
    // Predicated region
    $region6: #{tpu_custom_call.1} parent=1 // pred_check
      _
    $region7: #{tpu_custom_call.1} parent=1 // pred_check_branch
      %21 = sbr.rel (0) target = $region9
    $region8: #{tpu_custom_call.1} parent=1 // pred_region
      %22 = dma.done [#allocation3], 40960
    $region9: #{tpu_custom_call.1} parent=1 // pred_fallthru
      _
    %v23 = vld [vmem:[#allocation2] sm:$0xff]
    %v24 = vld [vmem:[#allocation2 + $0x8] sm:$0xff]
    %v25 = vld [vmem:[#allocation2 + $0x10] sm:$0xff]
    %v26 = vld [vmem:[#allocation2 + $0x18] sm:$0xff]
    %v27 = vld [vmem:[#allocation2 + $0x20] sm:$0xff]
    %v28 = vld [vmem:[#allocation2 + $0x28] sm:$0xff]
    %v29 = vld [vmem:[#allocation2 + $0x30] sm:$0xff]
    %v30 = vld [vmem:[#allocation2 + $0x38] sm:$0xff]
    %v31 = vld [vmem:[#allocation2 + $0x40] sm:$0xff]
    %v32 = vld [vmem:[#allocation2 + $0x48] sm:$0xff]
    %v33 = vld [vmem:[#allocation2 + $0x50] sm:$0xff]
    %v34 = vld [vmem:[#allocation2 + $0x58] sm:$0xff]
    %v35 = vld [vmem:[#allocation2 + $0x60] sm:$0xff]
    %v36 = vld [vmem:[#allocation2 + $0x68] sm:$0xff]
    %v37 = vld [vmem:[#allocation2 + $0x70] sm:$0xff]
    %v38 = vld [vmem:[#allocation2 + $0x78] sm:$0xff]
    %v39 = vld [vmem:[#allocation2 + $0x80] sm:$0xff]
    %v40 = vld [vmem:[#allocation2 + $0x88] sm:$0xff]
    %v41 = vld [vmem:[#allocation2 + $0x90] sm:$0xff]
    %v42 = vld [vmem:[#allocation2 + $0x98] sm:$0xff]
    %v43 = vld [vmem:[#allocation2 + $0xa0] sm:$0xff]
    %v44 = vld [vmem:[#allocation2 + $0xa8] sm:$0xff]
    %v45 = vld [vmem:[#allocation2 + $0xb0] sm:$0xff]
    %v46 = vld [vmem:[#allocation2 + $0xb8] sm:$0xff]
    %v47 = vld [vmem:[#allocation2 + $0xc0] sm:$0xff]
    %v48 = vld [vmem:[#allocation2 + $0xc8] sm:$0xff]
    %v49 = vld [vmem:[#allocation2 + $0xd0] sm:$0xff]
    %v50 = vld [vmem:[#allocation2 + $0xd8] sm:$0xff]
    %v51 = vld [vmem:[#allocation2 + $0xe0] sm:$0xff]
    %v52 = vld [vmem:[#allocation2 + $0xe8] sm:$0xff]
    %v53 = vld [vmem:[#allocation2 + $0xf0] sm:$0xff]
    %v54 = vld [vmem:[#allocation2 + $0xf8] sm:$0xff]
    %v55 = vld [vmem:[#allocation2 + $0x100] sm:$0xff]
    %v56 = vld [vmem:[#allocation2 + $0x108] sm:$0xff]
    %v57 = vld [vmem:[#allocation2 + $0x110] sm:$0xff]
    %v58 = vld [vmem:[#allocation2 + $0x118] sm:$0xff]
    %v59 = vld [vmem:[#allocation2 + $0x120] sm:$0xff]
    %v60 = vld [vmem:[#allocation2 + $0x128] sm:$0xff]
    %v61 = vld [vmem:[#allocation2 + $0x130] sm:$0xff]
    %v62 = vld [vmem:[#allocation2 + $0x138] sm:$0xff]
    %v63 = vld [vmem:[#allocation2 + $0x140] sm:$0xff]
    %v64 = vld [vmem:[#allocation2 + $0x148] sm:$0xff]
    %v65 = vld [vmem:[#allocation2 + $0x150] sm:$0xff]
    %v66 = vld [vmem:[#allocation2 + $0x158] sm:$0xff]
    %v67 = vld [vmem:[#allocation2 + $0x160] sm:$0xff]
    %v68 = vld [vmem:[#allocation2 + $0x168] sm:$0xff]
    %v69 = vld [vmem:[#allocation2 + $0x170] sm:$0xff]
    %v70 = vld [vmem:[#allocation2 + $0x178] sm:$0xff]
    %v71 = vld [vmem:[#allocation2 + $0x180] sm:$0xff]
    %v72 = vld [vmem:[#allocation2 + $0x188] sm:$0xff]
    %v73 = vld [vmem:[#allocation2 + $0x190] sm:$0xff]
    %v74 = vld [vmem:[#allocation2 + $0x198] sm:$0xff]
    %v75 = vld [vmem:[#allocation2 + $0x1a0] sm:$0xff]
    %v76 = vld [vmem:[#allocation2 + $0x1a8] sm:$0xff]
    %v77 = vld [vmem:[#allocation2 + $0x1b0] sm:$0xff]
    %v78 = vld [vmem:[#allocation2 + $0x1b8] sm:$0xff]
    %v79 = vld [vmem:[#allocation2 + $0x1c0] sm:$0xff]
    %v80 = vld [vmem:[#allocation2 + $0x1c8] sm:$0xff]
    %v81 = vld [vmem:[#allocation2 + $0x1d0] sm:$0xff]
    %v82 = vld [vmem:[#allocation2 + $0x1d8] sm:$0xff]
    %v83 = vld [vmem:[#allocation2 + $0x1e0] sm:$0xff]
    %v84 = vld [vmem:[#allocation2 + $0x1e8] sm:$0xff]
    %v85 = vld [vmem:[#allocation2 + $0x1f0] sm:$0xff]
    %v86 = vld [vmem:[#allocation2 + $0x1f8] sm:$0xff]
    %v87 = vld [vmem:[#allocation2 + $0x200] sm:$0xff]
    %v88 = vld [vmem:[#allocation2 + $0x208] sm:$0xff]
    %v89 = vld [vmem:[#allocation2 + $0x210] sm:$0xff]
    %v90 = vld [vmem:[#allocation2 + $0x218] sm:$0xff]
    %v91 = vld [vmem:[#allocation2 + $0x220] sm:$0xff]
    %v92 = vld [vmem:[#allocation2 + $0x228] sm:$0xff]
    %v93 = vld [vmem:[#allocation2 + $0x230] sm:$0xff]
    %v94 = vld [vmem:[#allocation2 + $0x238] sm:$0xff]
    %v95 = vld [vmem:[#allocation2 + $0x240] sm:$0xff]
    %v96 = vld [vmem:[#allocation2 + $0x248] sm:$0xff]
    %v97 = vld [vmem:[#allocation2 + $0x250] sm:$0xff]
    %v98 = vld [vmem:[#allocation2 + $0x258] sm:$0xff]
    %v99 = vld [vmem:[#allocation2 + $0x260] sm:$0xff]
    %v100 = vld [vmem:[#allocation2 + $0x268] sm:$0xff]
    %v101 = vld [vmem:[#allocation2 + $0x270] sm:$0xff]
    %v102 = vld [vmem:[#allocation2 + $0x278] sm:$0xff]
    %v103 = vld [vmem:[#allocation2 + $0x280] sm:$0xff]
    %v104 = vld [vmem:[#allocation2 + $0x288] sm:$0xff]
    %v105 = vld [vmem:[#allocation2 + $0x290] sm:$0xff]
    %v106 = vld [vmem:[#allocation2 + $0x298] sm:$0xff]
    %v107 = vld [vmem:[#allocation2 + $0x2a0] sm:$0xff]
    %v108 = vld [vmem:[#allocation2 + $0x2a8] sm:$0xff]
    %v109 = vld [vmem:[#allocation2 + $0x2b0] sm:$0xff]
    %v110 = vld [vmem:[#allocation2 + $0x2b8] sm:$0xff]
    %v111 = vld [vmem:[#allocation2 + $0x2c0] sm:$0xff]
    %v112 = vld [vmem:[#allocation2 + $0x2c8] sm:$0xff]
    %v113 = vld [vmem:[#allocation2 + $0x2d0] sm:$0xff]
    %v114 = vld [vmem:[#allocation2 + $0x2d8] sm:$0xff]
    %v115 = vld [vmem:[#allocation2 + $0x2e0] sm:$0xff]
    %v116 = vld [vmem:[#allocation2 + $0x2e8] sm:$0xff]
    %v117 = vld [vmem:[#allocation2 + $0x2f0] sm:$0xff]
    %v118 = vld [vmem:[#allocation2 + $0x2f8] sm:$0xff]
    %v119 = vld [vmem:[#allocation2 + $0x300] sm:$0xff]
    %v120 = vld [vmem:[#allocation2 + $0x308] sm:$0xff]
    %v121 = vld [vmem:[#allocation2 + $0x310] sm:$0xff]
    %v122 = vld [vmem:[#allocation2 + $0x318] sm:$0xff]
    %v123 = vld [vmem:[#allocation2 + $0x320] sm:$0xff]
    %v124 = vld [vmem:[#allocation2 + $0x328] sm:$0xff]
    %v125 = vld [vmem:[#allocation2 + $0x330] sm:$0xff]
    %v126 = vld [vmem:[#allocation2 + $0x338] sm:$0xff]
    %v127 = vld [vmem:[#allocation2 + $0x340] sm:$0xff]
    %v128 = vld [vmem:[#allocation2 + $0x348] sm:$0xff]
    %v129 = vld [vmem:[#allocation2 + $0x350] sm:$0xff]
    %v130 = vld [vmem:[#allocation2 + $0x358] sm:$0xff]
    %v131 = vld [vmem:[#allocation2 + $0x360] sm:$0xff]
    %v132 = vld [vmem:[#allocation2 + $0x368] sm:$0xff]
    %v133 = vld [vmem:[#allocation2 + $0x370] sm:$0xff]
    %v134 = vld [vmem:[#allocation2 + $0x378] sm:$0xff]
    %v135 = vld [vmem:[#allocation2 + $0x380] sm:$0xff]
    %v136 = vld [vmem:[#allocation2 + $0x388] sm:$0xff]
    %v137 = vld [vmem:[#allocation2 + $0x390] sm:$0xff]
    %v138 = vld [vmem:[#allocation2 + $0x398] sm:$0xff]
    %v139 = vld [vmem:[#allocation2 + $0x3a0] sm:$0xff]
    %v140 = vld [vmem:[#allocation2 + $0x3a8] sm:$0xff]
    %v141 = vld [vmem:[#allocation2 + $0x3b0] sm:$0xff]
    %v142 = vld [vmem:[#allocation2 + $0x3b8] sm:$0xff]
    %v143 = vld [vmem:[#allocation2 + $0x3c0] sm:$0xff]
    %v144 = vld [vmem:[#allocation2 + $0x3c8] sm:$0xff]
    %v145 = vld [vmem:[#allocation2 + $0x3d0] sm:$0xff]
    %v146 = vld [vmem:[#allocation2 + $0x3d8] sm:$0xff]
    %v147 = vld [vmem:[#allocation2 + $0x3e0] sm:$0xff]
    %v148 = vld [vmem:[#allocation2 + $0x3e8] sm:$0xff]
    %v149 = vld [vmem:[#allocation2 + $0x3f0] sm:$0xff]
    %v150 = vld [vmem:[#allocation2 + $0x3f8] sm:$0xff]
    %v151 = vld [vmem:[#allocation2 + $0x400] sm:$0xff]
    %v152 = vld [vmem:[#allocation2 + $0x408] sm:$0xff]
    %v153 = vld [vmem:[#allocation2 + $0x410] sm:$0xff]
    %v154 = vld [vmem:[#allocation2 + $0x418] sm:$0xff]
    %v155 = vld [vmem:[#allocation2 + $0x420] sm:$0xff]
    %v156 = vld [vmem:[#allocation2 + $0x428] sm:$0xff]
    %v157 = vld [vmem:[#allocation2 + $0x430] sm:$0xff]
    %v158 = vld [vmem:[#allocation2 + $0x438] sm:$0xff]
    %v159 = vld [vmem:[#allocation2 + $0x440] sm:$0xff]
    %v160 = vld [vmem:[#allocation2 + $0x448] sm:$0xff]
    %v161 = vld [vmem:[#allocation2 + $0x450] sm:$0xff]
    %v162 = vld [vmem:[#allocation2 + $0x458] sm:$0xff]
    %v163 = vld [vmem:[#allocation2 + $0x460] sm:$0xff]
    %v164 = vld [vmem:[#allocation2 + $0x468] sm:$0xff]
    %v165 = vld [vmem:[#allocation2 + $0x470] sm:$0xff]
    %v166 = vld [vmem:[#allocation2 + $0x478] sm:$0xff]
    %v167 = vld [vmem:[#allocation2 + $0x480] sm:$0xff]
    %v168 = vld [vmem:[#allocation2 + $0x488] sm:$0xff]
    %v169 = vld [vmem:[#allocation2 + $0x490] sm:$0xff]
    %v170 = vld [vmem:[#allocation2 + $0x498] sm:$0xff]
    %v171 = vld [vmem:[#allocation2 + $0x4a0] sm:$0xff]
    %v172 = vld [vmem:[#allocation2 + $0x4a8] sm:$0xff]
    %v173 = vld [vmem:[#allocation2 + $0x4b0] sm:$0xff]
    %v174 = vld [vmem:[#allocation2 + $0x4b8] sm:$0xff]
    %v175 = vld [vmem:[#allocation2 + $0x4c0] sm:$0xff]
    %v176 = vld [vmem:[#allocation2 + $0x4c8] sm:$0xff]
    %v177 = vld [vmem:[#allocation2 + $0x4d0] sm:$0xff]
    %v178 = vld [vmem:[#allocation2 + $0x4d8] sm:$0xff]
    %v179 = vld [vmem:[#allocation2 + $0x4e0] sm:$0xff]
    %v180 = vld [vmem:[#allocation2 + $0x4e8] sm:$0xff]
    %v181 = vld [vmem:[#allocation2 + $0x4f0] sm:$0xff]
    %v182 = vld [vmem:[#allocation2 + $0x4f8] sm:$0xff]
    %v183 = vld [vmem:[#allocation2 + $0x500] sm:$0xff]
    %v184 = vld [vmem:[#allocation2 + $0x508] sm:$0xff]
    %v185 = vld [vmem:[#allocation2 + $0x510] sm:$0xff]
    %v186 = vld [vmem:[#allocation2 + $0x518] sm:$0xff]
    %v187 = vld [vmem:[#allocation2 + $0x520] sm:$0xff]
    %v188 = vld [vmem:[#allocation2 + $0x528] sm:$0xff]
    %v189 = vld [vmem:[#allocation2 + $0x530] sm:$0xff]
    %v190 = vld [vmem:[#allocation2 + $0x538] sm:$0xff]
    %v191 = vld [vmem:[#allocation2 + $0x540] sm:$0xff]
    %v192 = vld [vmem:[#allocation2 + $0x548] sm:$0xff]
    %v193 = vld [vmem:[#allocation2 + $0x550] sm:$0xff]
    %v194 = vld [vmem:[#allocation2 + $0x558] sm:$0xff]
    %v195 = vld [vmem:[#allocation2 + $0x560] sm:$0xff]
    %v196 = vld [vmem:[#allocation2 + $0x568] sm:$0xff]
    %v197 = vld [vmem:[#allocation2 + $0x570] sm:$0xff]
    %v198 = vld [vmem:[#allocation2 + $0x578] sm:$0xff]
    %v199 = vld [vmem:[#allocation2 + $0x580] sm:$0xff]
    %v200 = vld [vmem:[#allocation2 + $0x588] sm:$0xff]
    %v201 = vld [vmem:[#allocation2 + $0x590] sm:$0xff]
    %v202 = vld [vmem:[#allocation2 + $0x598] sm:$0xff]
    %v203 = vld [vmem:[#allocation2 + $0x5a0] sm:$0xff]
    %v204 = vld [vmem:[#allocation2 + $0x5a8] sm:$0xff]
    %v205 = vld [vmem:[#allocation2 + $0x5b0] sm:$0xff]
    %v206 = vld [vmem:[#allocation2 + $0x5b8] sm:$0xff]
    %v207 = vld [vmem:[#allocation2 + $0x5c0] sm:$0xff]
    %v208 = vld [vmem:[#allocation2 + $0x5c8] sm:$0xff]
    %v209 = vld [vmem:[#allocation2 + $0x5d0] sm:$0xff]
    %v210 = vld [vmem:[#allocation2 + $0x5d8] sm:$0xff]
    %v211 = vld [vmem:[#allocation2 + $0x5e0] sm:$0xff]
    %v212 = vld [vmem:[#allocation2 + $0x5e8] sm:$0xff]
    %v213 = vld [vmem:[#allocation2 + $0x5f0] sm:$0xff]
    %v214 = vld [vmem:[#allocation2 + $0x5f8] sm:$0xff]
    %v215 = vld [vmem:[#allocation2 + $0x600] sm:$0xff]
    %v216 = vld [vmem:[#allocation2 + $0x608] sm:$0xff]
    %v217 = vld [vmem:[#allocation2 + $0x610] sm:$0xff]
    %v218 = vld [vmem:[#allocation2 + $0x618] sm:$0xff]
    %v219 = vld [vmem:[#allocation2 + $0x620] sm:$0xff]
    %v220 = vld [vmem:[#allocation2 + $0x628] sm:$0xff]
    %v221 = vld [vmem:[#allocation2 + $0x630] sm:$0xff]
    %v222 = vld [vmem:[#allocation2 + $0x638] sm:$0xff]
    %v223 = vld [vmem:[#allocation2 + $0x640] sm:$0xff]
    %v224 = vld [vmem:[#allocation2 + $0x648] sm:$0xff]
    %v225 = vld [vmem:[#allocation2 + $0x650] sm:$0xff]
    %v226 = vld [vmem:[#allocation2 + $0x658] sm:$0xff]
    %v227 = vld [vmem:[#allocation2 + $0x660] sm:$0xff]
    %v228 = vld [vmem:[#allocation2 + $0x668] sm:$0xff]
    %v229 = vld [vmem:[#allocation2 + $0x670] sm:$0xff]
    %v230 = vld [vmem:[#allocation2 + $0x678] sm:$0xff]
    %v231 = vld [vmem:[#allocation2 + $0x680] sm:$0xff]
    %v232 = vld [vmem:[#allocation2 + $0x688] sm:$0xff]
    %v233 = vld [vmem:[#allocation2 + $0x690] sm:$0xff]
    %v234 = vld [vmem:[#allocation2 + $0x698] sm:$0xff]
    %v235 = vld [vmem:[#allocation2 + $0x6a0] sm:$0xff]
    %v236 = vld [vmem:[#allocation2 + $0x6a8] sm:$0xff]
    %v237 = vld [vmem:[#allocation2 + $0x6b0] sm:$0xff]
    %v238 = vld [vmem:[#allocation2 + $0x6b8] sm:$0xff]
    %v239 = vld [vmem:[#allocation2 + $0x6c0] sm:$0xff]
    %v240 = vld [vmem:[#allocation2 + $0x6c8] sm:$0xff]
    %v241 = vld [vmem:[#allocation2 + $0x6d0] sm:$0xff]
    %v242 = vld [vmem:[#allocation2 + $0x6d8] sm:$0xff]
    %v243 = vld [vmem:[#allocation2 + $0x6e0] sm:$0xff]
    %v244 = vld [vmem:[#allocation2 + $0x6e8] sm:$0xff]
    %v245 = vld [vmem:[#allocation2 + $0x6f0] sm:$0xff]
    %v246 = vld [vmem:[#allocation2 + $0x6f8] sm:$0xff]
    %v247 = vld [vmem:[#allocation2 + $0x700] sm:$0xff]
    %v248 = vld [vmem:[#allocation2 + $0x708] sm:$0xff]
    %v249 = vld [vmem:[#allocation2 + $0x710] sm:$0xff]
    %v250 = vld [vmem:[#allocation2 + $0x718] sm:$0xff]
    %v251 = vld [vmem:[#allocation2 + $0x720] sm:$0xff]
    %v252 = vld [vmem:[#allocation2 + $0x728] sm:$0xff]
    %v253 = vld [vmem:[#allocation2 + $0x730] sm:$0xff]
    %v254 = vld [vmem:[#allocation2 + $0x738] sm:$0xff]
    %v255 = vld [vmem:[#allocation2 + $0x740] sm:$0xff]
    %v256 = vld [vmem:[#allocation2 + $0x748] sm:$0xff]
    %v257 = vld [vmem:[#allocation2 + $0x750] sm:$0xff]
    %v258 = vld [vmem:[#allocation2 + $0x758] sm:$0xff]
    %v259 = vld [vmem:[#allocation2 + $0x760] sm:$0xff]
    %v260 = vld [vmem:[#allocation2 + $0x768] sm:$0xff]
    %v261 = vld [vmem:[#allocation2 + $0x770] sm:$0xff]
    %v262 = vld [vmem:[#allocation2 + $0x778] sm:$0xff]
    %v263 = vld [vmem:[#allocation2 + $0x780] sm:$0xff]
    %v264 = vld [vmem:[#allocation2 + $0x788] sm:$0xff]
    %v265 = vld [vmem:[#allocation2 + $0x790] sm:$0xff]
    %v266 = vld [vmem:[#allocation2 + $0x798] sm:$0xff]
    %v267 = vld [vmem:[#allocation2 + $0x7a0] sm:$0xff]
    %v268 = vld [vmem:[#allocation2 + $0x7a8] sm:$0xff]
    %v269 = vld [vmem:[#allocation2 + $0x7b0] sm:$0xff]
    %v270 = vld [vmem:[#allocation2 + $0x7b8] sm:$0xff]
    %v271 = vld [vmem:[#allocation2 + $0x7c0] sm:$0xff]
    %v272 = vld [vmem:[#allocation2 + $0x7c8] sm:$0xff]
    %v273 = vld [vmem:[#allocation2 + $0x7d0] sm:$0xff]
    %v274 = vld [vmem:[#allocation2 + $0x7d8] sm:$0xff]
    %v275 = vld [vmem:[#allocation2 + $0x7e0] sm:$0xff]
    %v276 = vld [vmem:[#allocation2 + $0x7e8] sm:$0xff]
    %v277 = vld [vmem:[#allocation2 + $0x7f0] sm:$0xff]
    %v278 = vld [vmem:[#allocation2 + $0x7f8] sm:$0xff]
    %v279 = vld [vmem:[#allocation2 + $0x800] sm:$0xff]
    %v280 = vld [vmem:[#allocation2 + $0x808] sm:$0xff]
    %v281 = vld [vmem:[#allocation2 + $0x810] sm:$0xff]
    %v282 = vld [vmem:[#allocation2 + $0x818] sm:$0xff]
    %v283 = vld [vmem:[#allocation2 + $0x820] sm:$0xff]
    %v284 = vld [vmem:[#allocation2 + $0x828] sm:$0xff]
    %v285 = vld [vmem:[#allocation2 + $0x830] sm:$0xff]
    %v286 = vld [vmem:[#allocation2 + $0x838] sm:$0xff]
    %v287 = vld [vmem:[#allocation2 + $0x840] sm:$0xff]
    %v288 = vld [vmem:[#allocation2 + $0x848] sm:$0xff]
    %v289 = vld [vmem:[#allocation2 + $0x850] sm:$0xff]
    %v290 = vld [vmem:[#allocation2 + $0x858] sm:$0xff]
    %v291 = vld [vmem:[#allocation2 + $0x860] sm:$0xff]
    %v292 = vld [vmem:[#allocation2 + $0x868] sm:$0xff]
    %v293 = vld [vmem:[#allocation2 + $0x870] sm:$0xff]
    %v294 = vld [vmem:[#allocation2 + $0x878] sm:$0xff]
    %v295 = vld [vmem:[#allocation2 + $0x880] sm:$0xff]
    %v296 = vld [vmem:[#allocation2 + $0x888] sm:$0xff]
    %v297 = vld [vmem:[#allocation2 + $0x890] sm:$0xff]
    %v298 = vld [vmem:[#allocation2 + $0x898] sm:$0xff]
    %v299 = vld [vmem:[#allocation2 + $0x8a0] sm:$0xff]
    %v300 = vld [vmem:[#allocation2 + $0x8a8] sm:$0xff]
    %v301 = vld [vmem:[#allocation2 + $0x8b0] sm:$0xff]
    %v302 = vld [vmem:[#allocation2 + $0x8b8] sm:$0xff]
    %v303 = vld [vmem:[#allocation2 + $0x8c0] sm:$0xff]
    %v304 = vld [vmem:[#allocation2 + $0x8c8] sm:$0xff]
    %v305 = vld [vmem:[#allocation2 + $0x8d0] sm:$0xff]
    %v306 = vld [vmem:[#allocation2 + $0x8d8] sm:$0xff]
    %v307 = vld [vmem:[#allocation2 + $0x8e0] sm:$0xff]
    %v308 = vld [vmem:[#allocation2 + $0x8e8] sm:$0xff]
    %v309 = vld [vmem:[#allocation2 + $0x8f0] sm:$0xff]
    %v310 = vld [vmem:[#allocation2 + $0x8f8] sm:$0xff]
    %v311 = vld [vmem:[#allocation2 + $0x900] sm:$0xff]
    %v312 = vld [vmem:[#allocation2 + $0x908] sm:$0xff]
    %v313 = vld [vmem:[#allocation2 + $0x910] sm:$0xff]
    %v314 = vld [vmem:[#allocation2 + $0x918] sm:$0xff]
    %v315 = vld [vmem:[#allocation2 + $0x920] sm:$0xff]
    %v316 = vld [vmem:[#allocation2 + $0x928] sm:$0xff]
    %v317 = vld [vmem:[#allocation2 + $0x930] sm:$0xff]
    %v318 = vld [vmem:[#allocation2 + $0x938] sm:$0xff]
    %v319 = vld [vmem:[#allocation2 + $0x940] sm:$0xff]
    %v320 = vld [vmem:[#allocation2 + $0x948] sm:$0xff]
    %v321 = vld [vmem:[#allocation2 + $0x950] sm:$0xff]
    %v322 = vld [vmem:[#allocation2 + $0x958] sm:$0xff]
    %v323 = vld [vmem:[#allocation2 + $0x960] sm:$0xff]
    %v324 = vld [vmem:[#allocation2 + $0x968] sm:$0xff]
    %v325 = vld [vmem:[#allocation2 + $0x970] sm:$0xff]
    %v326 = vld [vmem:[#allocation2 + $0x978] sm:$0xff]
    %v327 = vld [vmem:[#allocation2 + $0x980] sm:$0xff]
    %v328 = vld [vmem:[#allocation2 + $0x988] sm:$0xff]
    %v329 = vld [vmem:[#allocation2 + $0x990] sm:$0xff]
    %v330 = vld [vmem:[#allocation2 + $0x998] sm:$0xff]
    %v331 = vld [vmem:[#allocation2 + $0x9a0] sm:$0xff]
    %v332 = vld [vmem:[#allocation2 + $0x9a8] sm:$0xff]
    %v333 = vld [vmem:[#allocation2 + $0x9b0] sm:$0xff]
    %v334 = vld [vmem:[#allocation2 + $0x9b8] sm:$0xff]
    %v335 = vld [vmem:[#allocation2 + $0x9c0] sm:$0xff]
    %v336 = vld [vmem:[#allocation2 + $0x9c8] sm:$0xff]
    %v337 = vld [vmem:[#allocation2 + $0x9d0] sm:$0xff]
    %v338 = vld [vmem:[#allocation2 + $0x9d8] sm:$0xff]
    %v339 = vld [vmem:[#allocation2 + $0x9e0] sm:$0xff]
    %v340 = vld [vmem:[#allocation2 + $0x9e8] sm:$0xff]
    %v341 = vld [vmem:[#allocation2 + $0x9f0] sm:$0xff]
    %v342 = vld [vmem:[#allocation2 + $0x9f8] sm:$0xff]
    %v343 = vmul.f32 %v23, 1.442695
    %v344 = vpow.pop %v343
    %v345 = vmul.f32 %v24, 1.442695
    %v346 = vpow.pop %v345
    %v347 = vmul.f32 %v25, 1.442695
    %v348 = vpow.pop %v347
    %v349 = vmul.f32 %v26, 1.442695
    %v350 = vpow.pop %v349
    %v351 = vmul.f32 %v27, 1.442695
    %v352 = vpow.pop %v351
    %v353 = vmul.f32 %v28, 1.442695
    %v354 = vpow.pop %v353
    %v355 = vmul.f32 %v29, 1.442695
    %v356 = vpow.pop %v355
    %v357 = vmul.f32 %v30, 1.442695
    %v358 = vpow.pop %v357
    %v359 = vmul.f32 %v31, 1.442695
    %v360 = vpow.pop %v359
    %v361 = vmul.f32 %v32, 1.442695
    %v362 = vpow.pop %v361
    %v363 = vmul.f32 %v33, 1.442695
    %v364 = vpow.pop %v363
    %v365 = vmul.f32 %v34, 1.442695
    %v366 = vpow.pop %v365
    %v367 = vmul.f32 %v35, 1.442695
    %v368 = vpow.pop %v367
    %v369 = vmul.f32 %v36, 1.442695
    %v370 = vpow.pop %v369
    %v371 = vmul.f32 %v37, 1.442695
    %v372 = vpow.pop %v371
    %v373 = vmul.f32 %v38, 1.442695
    %v374 = vpow.pop %v373
    %v375 = vmul.f32 %v39, 1.442695
    %v376 = vpow.pop %v375
    %v377 = vmul.f32 %v40, 1.442695
    %v378 = vpow.pop %v377
    %v379 = vmul.f32 %v41, 1.442695
    %v380 = vpow.pop %v379
    %v381 = vmul.f32 %v42, 1.442695
    %v382 = vpow.pop %v381
    %v383 = vmul.f32 %v43, 1.442695
    %v384 = vpow.pop %v383
    %v385 = vmul.f32 %v44, 1.442695
    %v386 = vpow.pop %v385
    %v387 = vmul.f32 %v45, 1.442695
    %v388 = vpow.pop %v387
    %v389 = vmul.f32 %v46, 1.442695
    %v390 = vpow.pop %v389
    %v391 = vmul.f32 %v47, 1.442695
    %v392 = vpow.pop %v391
    %v393 = vmul.f32 %v48, 1.442695
    %v394 = vpow.pop %v393
    %v395 = vmul.f32 %v49, 1.442695
    %v396 = vpow.pop %v395
    %v397 = vmul.f32 %v50, 1.442695
    %v398 = vpow.pop %v397
    %v399 = vmul.f32 %v51, 1.442695
    %v400 = vpow.pop %v399
    %v401 = vmul.f32 %v52, 1.442695
    %v402 = vpow.pop %v401
    %v403 = vmul.f32 %v53, 1.442695
    %v404 = vpow.pop %v403
    %v405 = vmul.f32 %v54, 1.442695
    %v406 = vpow.pop %v405
    %v407 = vmul.f32 %v55, 1.442695
    %v408 = vpow.pop %v407
    %v409 = vmul.f32 %v56, 1.442695
    %v410 = vpow.pop %v409
    %v411 = vmul.f32 %v57, 1.442695
    %v412 = vpow.pop %v411
    %v413 = vmul.f32 %v58, 1.442695
    %v414 = vpow.pop %v413
    %v415 = vmul.f32 %v59, 1.442695
    %v416 = vpow.pop %v415
    %v417 = vmul.f32 %v60, 1.442695
    %v418 = vpow.pop %v417
    %v419 = vmul.f32 %v61, 1.442695
    %v420 = vpow.pop %v419
    %v421 = vmul.f32 %v62, 1.442695
    %v422 = vpow.pop %v421
    %v423 = vmul.f32 %v63, 1.442695
    %v424 = vpow.pop %v423
    %v425 = vmul.f32 %v64, 1.442695
    %v426 = vpow.pop %v425
    %v427 = vmul.f32 %v65, 1.442695
    %v428 = vpow.pop %v427
    %v429 = vmul.f32 %v66, 1.442695
    %v430 = vpow.pop %v429
    %v431 = vmul.f32 %v67, 1.442695
    %v432 = vpow.pop %v431
    %v433 = vmul.f32 %v68, 1.442695
    %v434 = vpow.pop %v433
    %v435 = vmul.f32 %v69, 1.442695
    %v436 = vpow.pop %v435
    %v437 = vmul.f32 %v70, 1.442695
    %v438 = vpow.pop %v437
    %v439 = vmul.f32 %v71, 1.442695
    %v440 = vpow.pop %v439
    %v441 = vmul.f32 %v72, 1.442695
    %v442 = vpow.pop %v441
    %v443 = vmul.f32 %v73, 1.442695
    %v444 = vpow.pop %v443
    %v445 = vmul.f32 %v74, 1.442695
    %v446 = vpow.pop %v445
    %v447 = vmul.f32 %v75, 1.442695
    %v448 = vpow.pop %v447
    %v449 = vmul.f32 %v76, 1.442695
    %v450 = vpow.pop %v449
    %v451 = vmul.f32 %v77, 1.442695
    %v452 = vpow.pop %v451
    %v453 = vmul.f32 %v78, 1.442695
    %v454 = vpow.pop %v453
    %v455 = vmul.f32 %v79, 1.442695
    %v456 = vpow.pop %v455
    %v457 = vmul.f32 %v80, 1.442695
    %v458 = vpow.pop %v457
    %v459 = vmul.f32 %v81, 1.442695
    %v460 = vpow.pop %v459
    %v461 = vmul.f32 %v82, 1.442695
    %v462 = vpow.pop %v461
    %v463 = vmul.f32 %v83, 1.442695
    %v464 = vpow.pop %v463
    %v465 = vmul.f32 %v84, 1.442695
    %v466 = vpow.pop %v465
    %v467 = vmul.f32 %v85, 1.442695
    %v468 = vpow.pop %v467
    %v469 = vmul.f32 %v86, 1.442695
    %v470 = vpow.pop %v469
    %v471 = vmul.f32 %v87, 1.442695
    %v472 = vpow.pop %v471
    %v473 = vmul.f32 %v88, 1.442695
    %v474 = vpow.pop %v473
    %v475 = vmul.f32 %v89, 1.442695
    %v476 = vpow.pop %v475
    %v477 = vmul.f32 %v90, 1.442695
    %v478 = vpow.pop %v477
    %v479 = vmul.f32 %v91, 1.442695
    %v480 = vpow.pop %v479
    %v481 = vmul.f32 %v92, 1.442695
    %v482 = vpow.pop %v481
    %v483 = vmul.f32 %v93, 1.442695
    %v484 = vpow.pop %v483
    %v485 = vmul.f32 %v94, 1.442695
    %v486 = vpow.pop %v485
    %v487 = vmul.f32 %v95, 1.442695
    %v488 = vpow.pop %v487
    %v489 = vmul.f32 %v96, 1.442695
    %v490 = vpow.pop %v489
    %v491 = vmul.f32 %v97, 1.442695
    %v492 = vpow.pop %v491
    %v493 = vmul.f32 %v98, 1.442695
    %v494 = vpow.pop %v493
    %v495 = vmul.f32 %v99, 1.442695
    %v496 = vpow.pop %v495
    %v497 = vmul.f32 %v100, 1.442695
    %v498 = vpow.pop %v497
    %v499 = vmul.f32 %v101, 1.442695
    %v500 = vpow.pop %v499
    %v501 = vmul.f32 %v102, 1.442695
    %v502 = vpow.pop %v501
    %v503 = vmul.f32 %v103, 1.442695
    %v504 = vpow.pop %v503
    %v505 = vmul.f32 %v104, 1.442695
    %v506 = vpow.pop %v505
    %v507 = vmul.f32 %v105, 1.442695
    %v508 = vpow.pop %v507
    %v509 = vmul.f32 %v106, 1.442695
    %v510 = vpow.pop %v509
    %v511 = vmul.f32 %v107, 1.442695
    %v512 = vpow.pop %v511
    %v513 = vmul.f32 %v108, 1.442695
    %v514 = vpow.pop %v513
    %v515 = vmul.f32 %v109, 1.442695
    %v516 = vpow.pop %v515
    %v517 = vmul.f32 %v110, 1.442695
    %v518 = vpow.pop %v517
    %v519 = vmul.f32 %v111, 1.442695
    %v520 = vpow.pop %v519
    %v521 = vmul.f32 %v112, 1.442695
    %v522 = vpow.pop %v521
    %v523 = vmul.f32 %v113, 1.442695
    %v524 = vpow.pop %v523
    %v525 = vmul.f32 %v114, 1.442695
    %v526 = vpow.pop %v525
    %v527 = vmul.f32 %v115, 1.442695
    %v528 = vpow.pop %v527
    %v529 = vmul.f32 %v116, 1.442695
    %v530 = vpow.pop %v529
    %v531 = vmul.f32 %v117, 1.442695
    %v532 = vpow.pop %v531
    %v533 = vmul.f32 %v118, 1.442695
    %v534 = vpow.pop %v533
    %v535 = vmul.f32 %v119, 1.442695
    %v536 = vpow.pop %v535
    %v537 = vmul.f32 %v120, 1.442695
    %v538 = vpow.pop %v537
    %v539 = vmul.f32 %v121, 1.442695
    %v540 = vpow.pop %v539
    %v541 = vmul.f32 %v122, 1.442695
    %v542 = vpow.pop %v541
    %v543 = vmul.f32 %v123, 1.442695
    %v544 = vpow.pop %v543
    %v545 = vmul.f32 %v124, 1.442695
    %v546 = vpow.pop %v545
    %v547 = vmul.f32 %v125, 1.442695
    %v548 = vpow.pop %v547
    %v549 = vmul.f32 %v126, 1.442695
    %v550 = vpow.pop %v549
    %v551 = vmul.f32 %v127, 1.442695
    %v552 = vpow.pop %v551
    %v553 = vmul.f32 %v128, 1.442695
    %v554 = vpow.pop %v553
    %v555 = vmul.f32 %v129, 1.442695
    %v556 = vpow.pop %v555
    %v557 = vmul.f32 %v130, 1.442695
    %v558 = vpow.pop %v557
    %v559 = vmul.f32 %v131, 1.442695
    %v560 = vpow.pop %v559
    %v561 = vmul.f32 %v132, 1.442695
    %v562 = vpow.pop %v561
    %v563 = vmul.f32 %v133, 1.442695
    %v564 = vpow.pop %v563
    %v565 = vmul.f32 %v134, 1.442695
    %v566 = vpow.pop %v565
    %v567 = vmul.f32 %v135, 1.442695
    %v568 = vpow.pop %v567
    %v569 = vmul.f32 %v136, 1.442695
    %v570 = vpow.pop %v569
    %v571 = vmul.f32 %v137, 1.442695
    %v572 = vpow.pop %v571
    %v573 = vmul.f32 %v138, 1.442695
    %v574 = vpow.pop %v573
    %v575 = vmul.f32 %v139, 1.442695
    %v576 = vpow.pop %v575
    %v577 = vmul.f32 %v140, 1.442695
    %v578 = vpow.pop %v577
    %v579 = vmul.f32 %v141, 1.442695
    %v580 = vpow.pop %v579
    %v581 = vmul.f32 %v142, 1.442695
    %v582 = vpow.pop %v581
    %v583 = vmul.f32 %v143, 1.442695
    %v584 = vpow.pop %v583
    %v585 = vmul.f32 %v144, 1.442695
    %v586 = vpow.pop %v585
    %v587 = vmul.f32 %v145, 1.442695
    %v588 = vpow.pop %v587
    %v589 = vmul.f32 %v146, 1.442695
    %v590 = vpow.pop %v589
    %v591 = vmul.f32 %v147, 1.442695
    %v592 = vpow.pop %v591
    %v593 = vmul.f32 %v148, 1.442695
    %v594 = vpow.pop %v593
    %v595 = vmul.f32 %v149, 1.442695
    %v596 = vpow.pop %v595
    %v597 = vmul.f32 %v150, 1.442695
    %v598 = vpow.pop %v597
    %v599 = vmul.f32 %v151, 1.442695
    %v600 = vpow.pop %v599
    %v601 = vmul.f32 %v152, 1.442695
    %v602 = vpow.pop %v601
    %v603 = vmul.f32 %v153, 1.442695
    %v604 = vpow.pop %v603
    %v605 = vmul.f32 %v154, 1.442695
    %v606 = vpow.pop %v605
    %v607 = vmul.f32 %v155, 1.442695
    %v608 = vpow.pop %v607
    %v609 = vmul.f32 %v156, 1.442695
    %v610 = vpow.pop %v609
    %v611 = vmul.f32 %v157, 1.442695
    %v612 = vpow.pop %v611
    %v613 = vmul.f32 %v158, 1.442695
    %v614 = vpow.pop %v613
    %v615 = vmul.f32 %v159, 1.442695
    %v616 = vpow.pop %v615
    %v617 = vmul.f32 %v160, 1.442695
    %v618 = vpow.pop %v617
    %v619 = vmul.f32 %v161, 1.442695
    %v620 = vpow.pop %v619
    %v621 = vmul.f32 %v162, 1.442695
    %v622 = vpow.pop %v621
    %v623 = vmul.f32 %v163, 1.442695
    %v624 = vpow.pop %v623
    %v625 = vmul.f32 %v164, 1.442695
    %v626 = vpow.pop %v625
    %v627 = vmul.f32 %v165, 1.442695
    %v628 = vpow.pop %v627
    %v629 = vmul.f32 %v166, 1.442695
    %v630 = vpow.pop %v629
    %v631 = vmul.f32 %v167, 1.442695
    %v632 = vpow.pop %v631
    %v633 = vmul.f32 %v168, 1.442695
    %v634 = vpow.pop %v633
    %v635 = vmul.f32 %v169, 1.442695
    %v636 = vpow.pop %v635
    %v637 = vmul.f32 %v170, 1.442695
    %v638 = vpow.pop %v637
    %v639 = vmul.f32 %v171, 1.442695
    %v640 = vpow.pop %v639
    %v641 = vmul.f32 %v172, 1.442695
    %v642 = vpow.pop %v641
    %v643 = vmul.f32 %v173, 1.442695
    %v644 = vpow.pop %v643
    %v645 = vmul.f32 %v174, 1.442695
    %v646 = vpow.pop %v645
    %v647 = vmul.f32 %v175, 1.442695
    %v648 = vpow.pop %v647
    %v649 = vmul.f32 %v176, 1.442695
    %v650 = vpow.pop %v649
    %v651 = vmul.f32 %v177, 1.442695
    %v652 = vpow.pop %v651
    %v653 = vmul.f32 %v178, 1.442695
    %v654 = vpow.pop %v653
    %v655 = vmul.f32 %v179, 1.442695
    %v656 = vpow.pop %v655
    %v657 = vmul.f32 %v180, 1.442695
    %v658 = vpow.pop %v657
    %v659 = vmul.f32 %v181, 1.442695
    %v660 = vpow.pop %v659
    %v661 = vmul.f32 %v182, 1.442695
    %v662 = vpow.pop %v661
    %v663 = vmul.f32 %v183, 1.442695
    %v664 = vpow.pop %v663
    %v665 = vmul.f32 %v184, 1.442695
    %v666 = vpow.pop %v665
    %v667 = vmul.f32 %v185, 1.442695
    %v668 = vpow.pop %v667
    %v669 = vmul.f32 %v186, 1.442695
    %v670 = vpow.pop %v669
    %v671 = vmul.f32 %v187, 1.442695
    %v672 = vpow.pop %v671
    %v673 = vmul.f32 %v188, 1.442695
    %v674 = vpow.pop %v673
    %v675 = vmul.f32 %v189, 1.442695
    %v676 = vpow.pop %v675
    %v677 = vmul.f32 %v190, 1.442695
    %v678 = vpow.pop %v677
    %v679 = vmul.f32 %v191, 1.442695
    %v680 = vpow.pop %v679
    %v681 = vmul.f32 %v192, 1.442695
    %v682 = vpow.pop %v681
    %v683 = vmul.f32 %v193, 1.442695
    %v684 = vpow.pop %v683
    %v685 = vmul.f32 %v194, 1.442695
    %v686 = vpow.pop %v685
    %v687 = vmul.f32 %v195, 1.442695
    %v688 = vpow.pop %v687
    %v689 = vmul.f32 %v196, 1.442695
    %v690 = vpow.pop %v689
    %v691 = vmul.f32 %v197, 1.442695
    %v692 = vpow.pop %v691
    %v693 = vmul.f32 %v198, 1.442695
    %v694 = vpow.pop %v693
    %v695 = vmul.f32 %v199, 1.442695
    %v696 = vpow.pop %v695
    %v697 = vmul.f32 %v200, 1.442695
    %v698 = vpow.pop %v697
    %v699 = vmul.f32 %v201, 1.442695
    %v700 = vpow.pop %v699
    %v701 = vmul.f32 %v202, 1.442695
    %v702 = vpow.pop %v701
    %v703 = vmul.f32 %v203, 1.442695
    %v704 = vpow.pop %v703
    %v705 = vmul.f32 %v204, 1.442695
    %v706 = vpow.pop %v705
    %v707 = vmul.f32 %v205, 1.442695
    %v708 = vpow.pop %v707
    %v709 = vmul.f32 %v206, 1.442695
    %v710 = vpow.pop %v709
    %v711 = vmul.f32 %v207, 1.442695
    %v712 = vpow.pop %v711
    %v713 = vmul.f32 %v208, 1.442695
    %v714 = vpow.pop %v713
    %v715 = vmul.f32 %v209, 1.442695
    %v716 = vpow.pop %v715
    %v717 = vmul.f32 %v210, 1.442695
    %v718 = vpow.pop %v717
    %v719 = vmul.f32 %v211, 1.442695
    %v720 = vpow.pop %v719
    %v721 = vmul.f32 %v212, 1.442695
    %v722 = vpow.pop %v721
    %v723 = vmul.f32 %v213, 1.442695
    %v724 = vpow.pop %v723
    %v725 = vmul.f32 %v214, 1.442695
    %v726 = vpow.pop %v725
    %v727 = vmul.f32 %v215, 1.442695
    %v728 = vpow.pop %v727
    %v729 = vmul.f32 %v216, 1.442695
    %v730 = vpow.pop %v729
    %v731 = vmul.f32 %v217, 1.442695
    %v732 = vpow.pop %v731
    %v733 = vmul.f32 %v218, 1.442695
    %v734 = vpow.pop %v733
    %v735 = vmul.f32 %v219, 1.442695
    %v736 = vpow.pop %v735
    %v737 = vmul.f32 %v220, 1.442695
    %v738 = vpow.pop %v737
    %v739 = vmul.f32 %v221, 1.442695
    %v740 = vpow.pop %v739
    %v741 = vmul.f32 %v222, 1.442695
    %v742 = vpow.pop %v741
    %v743 = vmul.f32 %v223, 1.442695
    %v744 = vpow.pop %v743
    %v745 = vmul.f32 %v224, 1.442695
    %v746 = vpow.pop %v745
    %v747 = vmul.f32 %v225, 1.442695
    %v748 = vpow.pop %v747
    %v749 = vmul.f32 %v226, 1.442695
    %v750 = vpow.pop %v749
    %v751 = vmul.f32 %v227, 1.442695
    %v752 = vpow.pop %v751
    %v753 = vmul.f32 %v228, 1.442695
    %v754 = vpow.pop %v753
    %v755 = vmul.f32 %v229, 1.442695
    %v756 = vpow.pop %v755
    %v757 = vmul.f32 %v230, 1.442695
    %v758 = vpow.pop %v757
    %v759 = vmul.f32 %v231, 1.442695
    %v760 = vpow.pop %v759
    %v761 = vmul.f32 %v232, 1.442695
    %v762 = vpow.pop %v761
    %v763 = vmul.f32 %v233, 1.442695
    %v764 = vpow.pop %v763
    %v765 = vmul.f32 %v234, 1.442695
    %v766 = vpow.pop %v765
    %v767 = vmul.f32 %v235, 1.442695
    %v768 = vpow.pop %v767
    %v769 = vmul.f32 %v236, 1.442695
    %v770 = vpow.pop %v769
    %v771 = vmul.f32 %v237, 1.442695
    %v772 = vpow.pop %v771
    %v773 = vmul.f32 %v238, 1.442695
    %v774 = vpow.pop %v773
    %v775 = vmul.f32 %v239, 1.442695
    %v776 = vpow.pop %v775
    %v777 = vmul.f32 %v240, 1.442695
    %v778 = vpow.pop %v777
    %v779 = vmul.f32 %v241, 1.442695
    %v780 = vpow.pop %v779
    %v781 = vmul.f32 %v242, 1.442695
    %v782 = vpow.pop %v781
    %v783 = vmul.f32 %v243, 1.442695
    %v784 = vpow.pop %v783
    %v785 = vmul.f32 %v244, 1.442695
    %v786 = vpow.pop %v785
    %v787 = vmul.f32 %v245, 1.442695
    %v788 = vpow.pop %v787
    %v789 = vmul.f32 %v246, 1.442695
    %v790 = vpow.pop %v789
    %v791 = vmul.f32 %v247, 1.442695
    %v792 = vpow.pop %v791
    %v793 = vmul.f32 %v248, 1.442695
    %v794 = vpow.pop %v793
    %v795 = vmul.f32 %v249, 1.442695
    %v796 = vpow.pop %v795
    %v797 = vmul.f32 %v250, 1.442695
    %v798 = vpow.pop %v797
    %v799 = vmul.f32 %v251, 1.442695
    %v800 = vpow.pop %v799
    %v801 = vmul.f32 %v252, 1.442695
    %v802 = vpow.pop %v801
    %v803 = vmul.f32 %v253, 1.442695
    %v804 = vpow.pop %v803
    %v805 = vmul.f32 %v254, 1.442695
    %v806 = vpow.pop %v805
    %v807 = vmul.f32 %v255, 1.442695
    %v808 = vpow.pop %v807
    %v809 = vmul.f32 %v256, 1.442695
    %v810 = vpow.pop %v809
    %v811 = vmul.f32 %v257, 1.442695
    %v812 = vpow.pop %v811
    %v813 = vmul.f32 %v258, 1.442695
    %v814 = vpow.pop %v813
    %v815 = vmul.f32 %v259, 1.442695
    %v816 = vpow.pop %v815
    %v817 = vmul.f32 %v260, 1.442695
    %v818 = vpow.pop %v817
    %v819 = vmul.f32 %v261, 1.442695
    %v820 = vpow.pop %v819
    %v821 = vmul.f32 %v262, 1.442695
    %v822 = vpow.pop %v821
    %v823 = vmul.f32 %v263, 1.442695
    %v824 = vpow.pop %v823
    %v825 = vmul.f32 %v264, 1.442695
    %v826 = vpow.pop %v825
    %v827 = vmul.f32 %v265, 1.442695
    %v828 = vpow.pop %v827
    %v829 = vmul.f32 %v266, 1.442695
    %v830 = vpow.pop %v829
    %v831 = vmul.f32 %v267, 1.442695
    %v832 = vpow.pop %v831
    %v833 = vmul.f32 %v268, 1.442695
    %v834 = vpow.pop %v833
    %v835 = vmul.f32 %v269, 1.442695
    %v836 = vpow.pop %v835
    %v837 = vmul.f32 %v270, 1.442695
    %v838 = vpow.pop %v837
    %v839 = vmul.f32 %v271, 1.442695
    %v840 = vpow.pop %v839
    %v841 = vmul.f32 %v272, 1.442695
    %v842 = vpow.pop %v841
    %v843 = vmul.f32 %v273, 1.442695
    %v844 = vpow.pop %v843
    %v845 = vmul.f32 %v274, 1.442695
    %v846 = vpow.pop %v845
    %v847 = vmul.f32 %v275, 1.442695
    %v848 = vpow.pop %v847
    %v849 = vmul.f32 %v276, 1.442695
    %v850 = vpow.pop %v849
    %v851 = vmul.f32 %v277, 1.442695
    %v852 = vpow.pop %v851
    %v853 = vmul.f32 %v278, 1.442695
    %v854 = vpow.pop %v853
    %v855 = vmul.f32 %v279, 1.442695
    %v856 = vpow.pop %v855
    %v857 = vmul.f32 %v280, 1.442695
    %v858 = vpow.pop %v857
    %v859 = vmul.f32 %v281, 1.442695
    %v860 = vpow.pop %v859
    %v861 = vmul.f32 %v282, 1.442695
    %v862 = vpow.pop %v861
    %v863 = vmul.f32 %v283, 1.442695
    %v864 = vpow.pop %v863
    %v865 = vmul.f32 %v284, 1.442695
    %v866 = vpow.pop %v865
    %v867 = vmul.f32 %v285, 1.442695
    %v868 = vpow.pop %v867
    %v869 = vmul.f32 %v286, 1.442695
    %v870 = vpow.pop %v869
    %v871 = vmul.f32 %v287, 1.442695
    %v872 = vpow.pop %v871
    %v873 = vmul.f32 %v288, 1.442695
    %v874 = vpow.pop %v873
    %v875 = vmul.f32 %v289, 1.442695
    %v876 = vpow.pop %v875
    %v877 = vmul.f32 %v290, 1.442695
    %v878 = vpow.pop %v877
    %v879 = vmul.f32 %v291, 1.442695
    %v880 = vpow.pop %v879
    %v881 = vmul.f32 %v292, 1.442695
    %v882 = vpow.pop %v881
    %v883 = vmul.f32 %v293, 1.442695
    %v884 = vpow.pop %v883
    %v885 = vmul.f32 %v294, 1.442695
    %v886 = vpow.pop %v885
    %v887 = vmul.f32 %v295, 1.442695
    %v888 = vpow.pop %v887
    %v889 = vmul.f32 %v296, 1.442695
    %v890 = vpow.pop %v889
    %v891 = vmul.f32 %v297, 1.442695
    %v892 = vpow.pop %v891
    %v893 = vmul.f32 %v298, 1.442695
    %v894 = vpow.pop %v893
    %v895 = vmul.f32 %v299, 1.442695
    %v896 = vpow.pop %v895
    %v897 = vmul.f32 %v300, 1.442695
    %v898 = vpow.pop %v897
    %v899 = vmul.f32 %v301, 1.442695
    %v900 = vpow.pop %v899
    %v901 = vmul.f32 %v302, 1.442695
    %v902 = vpow.pop %v901
    %v903 = vmul.f32 %v303, 1.442695
    %v904 = vpow.pop %v903
    %v905 = vmul.f32 %v304, 1.442695
    %v906 = vpow.pop %v905
    %v907 = vmul.f32 %v305, 1.442695
    %v908 = vpow.pop %v907
    %v909 = vmul.f32 %v306, 1.442695
    %v910 = vpow.pop %v909
    %v911 = vmul.f32 %v307, 1.442695
    %v912 = vpow.pop %v911
    %v913 = vmul.f32 %v308, 1.442695
    %v914 = vpow.pop %v913
    %v915 = vmul.f32 %v309, 1.442695
    %v916 = vpow.pop %v915
    %v917 = vmul.f32 %v310, 1.442695
    %v918 = vpow.pop %v917
    %v919 = vmul.f32 %v311, 1.442695
    %v920 = vpow.pop %v919
    %v921 = vmul.f32 %v312, 1.442695
    %v922 = vpow.pop %v921
    %v923 = vmul.f32 %v313, 1.442695
    %v924 = vpow.pop %v923
    %v925 = vmul.f32 %v314, 1.442695
    %v926 = vpow.pop %v925
    %v927 = vmul.f32 %v315, 1.442695
    %v928 = vpow.pop %v927
    %v929 = vmul.f32 %v316, 1.442695
    %v930 = vpow.pop %v929
    %v931 = vmul.f32 %v317, 1.442695
    %v932 = vpow.pop %v931
    %v933 = vmul.f32 %v318, 1.442695
    %v934 = vpow.pop %v933
    %v935 = vmul.f32 %v319, 1.442695
    %v936 = vpow.pop %v935
    %v937 = vmul.f32 %v320, 1.442695
    %v938 = vpow.pop %v937
    %v939 = vmul.f32 %v321, 1.442695
    %v940 = vpow.pop %v939
    %v941 = vmul.f32 %v322, 1.442695
    %v942 = vpow.pop %v941
    %v943 = vmul.f32 %v323, 1.442695
    %v944 = vpow.pop %v943
    %v945 = vmul.f32 %v324, 1.442695
    %v946 = vpow.pop %v945
    %v947 = vmul.f32 %v325, 1.442695
    %v948 = vpow.pop %v947
    %v949 = vmul.f32 %v326, 1.442695
    %v950 = vpow.pop %v949
    %v951 = vmul.f32 %v327, 1.442695
    %v952 = vpow.pop %v951
    %v953 = vmul.f32 %v328, 1.442695
    %v954 = vpow.pop %v953
    %v955 = vmul.f32 %v329, 1.442695
    %v956 = vpow.pop %v955
    %v957 = vmul.f32 %v330, 1.442695
    %v958 = vpow.pop %v957
    %v959 = vmul.f32 %v331, 1.442695
    %v960 = vpow.pop %v959
    %v961 = vmul.f32 %v332, 1.442695
    %v962 = vpow.pop %v961
    %v963 = vmul.f32 %v333, 1.442695
    %v964 = vpow.pop %v963
    %v965 = vmul.f32 %v334, 1.442695
    %v966 = vpow.pop %v965
    %v967 = vmul.f32 %v335, 1.442695
    %v968 = vpow.pop %v967
    %v969 = vmul.f32 %v336, 1.442695
    %v970 = vpow.pop %v969
    %v971 = vmul.f32 %v337, 1.442695
    %v972 = vpow.pop %v971
    %v973 = vmul.f32 %v338, 1.442695
    %v974 = vpow.pop %v973
    %v975 = vmul.f32 %v339, 1.442695
    %v976 = vpow.pop %v975
    %v977 = vmul.f32 %v340, 1.442695
    %v978 = vpow.pop %v977
    %v979 = vmul.f32 %v341, 1.442695
    %v980 = vpow.pop %v979
    %v981 = vmul.f32 %v342, 1.442695
    %v982 = vpow.pop %v981
    %v983 = vadd.f32 %v344, %v354
    %v984 = vadd.f32 %v983, %v364
    %v985 = vadd.f32 %v984, %v374
    %v986 = vadd.f32 %v985, %v384
    %v987 = vadd.f32 %v986, %v394
    %v988 = vadd.f32 %v987, %v404
    %v989 = vadd.f32 %v988, %v414
    %v990 = vadd.f32 %v989, %v424
    %v991 = vadd.f32 %v990, %v434
    %v992 = vadd.f32 %v991, %v444
    %v993 = vadd.f32 %v992, %v454
    %v994 = vadd.f32 %v993, %v464
    %v995 = vadd.f32 %v994, %v474
    %v996 = vadd.f32 %v995, %v484
    %v997 = vadd.f32 %v996, %v494
    %v998 = vadd.f32 %v997, %v504
    %v999 = vadd.f32 %v998, %v514
    %v1000 = vadd.f32 %v999, %v524
    %v1001 = vadd.f32 %v1000, %v534
    %v1002 = vadd.f32 %v1001, %v544
    %v1003 = vadd.f32 %v1002, %v554
    %v1004 = vadd.f32 %v1003, %v564
    %v1005 = vadd.f32 %v1004, %v574
    %v1006 = vadd.f32 %v1005, %v584
    %v1007 = vadd.f32 %v1006, %v594
    %v1008 = vadd.f32 %v1007, %v604
    %v1009 = vadd.f32 %v1008, %v614
    %v1010 = vadd.f32 %v1009, %v624
    %v1011 = vadd.f32 %v1010, %v634
    %v1012 = vadd.f32 %v1011, %v644
    %v1013 = vadd.f32 %v1012, %v654
    %v1014 = vadd.f32 %v1013, %v664
    %v1015 = vadd.f32 %v1014, %v674
    %v1016 = vadd.f32 %v1015, %v684
    %v1017 = vadd.f32 %v1016, %v694
    %v1018 = vadd.f32 %v1017, %v704
    %v1019 = vadd.f32 %v1018, %v714
    %v1020 = vadd.f32 %v1019, %v724
    %v1021 = vadd.f32 %v1020, %v734
    %v1022 = vadd.f32 %v1021, %v744
    %v1023 = vadd.f32 %v1022, %v754
    %v1024 = vadd.f32 %v1023, %v764
    %v1025 = vadd.f32 %v1024, %v774
    %v1026 = vadd.f32 %v1025, %v784
    %v1027 = vadd.f32 %v1026, %v794
    %v1028 = vadd.f32 %v1027, %v804
    %v1029 = vadd.f32 %v1028, %v814
    %v1030 = vadd.f32 %v1029, %v824
    %v1031 = vadd.f32 %v1030, %v834
    %v1032 = vadd.f32 %v1031, %v844
    %v1033 = vadd.f32 %v1032, %v854
    %v1034 = vadd.f32 %v1033, %v864
    %v1035 = vadd.f32 %v1034, %v874
    %v1036 = vadd.f32 %v1035, %v884
    %v1037 = vadd.f32 %v1036, %v894
    %v1038 = vadd.f32 %v1037, %v904
    %v1039 = vadd.f32 %v1038, %v914
    %v1040 = vadd.f32 %v1039, %v924
    %v1041 = vadd.f32 %v1040, %v934
    %v1042 = vadd.f32 %v1041, %v944
    %v1043 = vadd.f32 %v1042, %v954
    %v1044 = vadd.f32 %v1043, %v964
    %v1045 = vadd.f32 %v1044, %v974
    %v1046 = vrot.slane %v1045, 4
    %v1047 = vadd.f32 %v1045, %v1046
    %v1048 = vrot.slane %v1047, 2
    %v1049 = vadd.f32 %v1047, %v1048
    %v1050 = vrot.slane %v1049, 1
    %v1051 = vadd.f32 %v1049, %v1050
    %v1052 = vadd.f32 %v346, %v356
    %v1053 = vadd.f32 %v1052, %v366
    %v1054 = vadd.f32 %v1053, %v376
    %v1055 = vadd.f32 %v1054, %v386
    %v1056 = vadd.f32 %v1055, %v396
    %v1057 = vadd.f32 %v1056, %v406
    %v1058 = vadd.f32 %v1057, %v416
    %v1059 = vadd.f32 %v1058, %v426
    %v1060 = vadd.f32 %v1059, %v436
    %v1061 = vadd.f32 %v1060, %v446
    %v1062 = vadd.f32 %v1061, %v456
    %v1063 = vadd.f32 %v1062, %v466
    %v1064 = vadd.f32 %v1063, %v476
    %v1065 = vadd.f32 %v1064, %v486
    %v1066 = vadd.f32 %v1065, %v496
    %v1067 = vadd.f32 %v1066, %v506
    %v1068 = vadd.f32 %v1067, %v516
    %v1069 = vadd.f32 %v1068, %v526
    %v1070 = vadd.f32 %v1069, %v536
    %v1071 = vadd.f32 %v1070, %v546
    %v1072 = vadd.f32 %v1071, %v556
    %v1073 = vadd.f32 %v1072, %v566
    %v1074 = vadd.f32 %v1073, %v576
    %v1075 = vadd.f32 %v1074, %v586
    %v1076 = vadd.f32 %v1075, %v596
    %v1077 = vadd.f32 %v1076, %v606
    %v1078 = vadd.f32 %v1077, %v616
    %v1079 = vadd.f32 %v1078, %v626
    %v1080 = vadd.f32 %v1079, %v636
    %v1081 = vadd.f32 %v1080, %v646
    %v1082 = vadd.f32 %v1081, %v656
    %v1083 = vadd.f32 %v1082, %v666
    %v1084 = vadd.f32 %v1083, %v676
    %v1085 = vadd.f32 %v1084, %v686
    %v1086 = vadd.f32 %v1085, %v696
    %v1087 = vadd.f32 %v1086, %v706
    %v1088 = vadd.f32 %v1087, %v716
    %v1089 = vadd.f32 %v1088, %v726
    %v1090 = vadd.f32 %v1089, %v736
    %v1091 = vadd.f32 %v1090, %v746
    %v1092 = vadd.f32 %v1091, %v756
    %v1093 = vadd.f32 %v1092, %v766
    %v1094 = vadd.f32 %v1093, %v776
    %v1095 = vadd.f32 %v1094, %v786
    %v1096 = vadd.f32 %v1095, %v796
    %v1097 = vadd.f32 %v1096, %v806
    %v1098 = vadd.f32 %v1097, %v816
    %v1099 = vadd.f32 %v1098, %v826
    %v1100 = vadd.f32 %v1099, %v836
    %v1101 = vadd.f32 %v1100, %v846
    %v1102 = vadd.f32 %v1101, %v856
    %v1103 = vadd.f32 %v1102, %v866
    %v1104 = vadd.f32 %v1103, %v876
    %v1105 = vadd.f32 %v1104, %v886
    %v1106 = vadd.f32 %v1105, %v896
    %v1107 = vadd.f32 %v1106, %v906
    %v1108 = vadd.f32 %v1107, %v916
    %v1109 = vadd.f32 %v1108, %v926
    %v1110 = vadd.f32 %v1109, %v936
    %v1111 = vadd.f32 %v1110, %v946
    %v1112 = vadd.f32 %v1111, %v956
    %v1113 = vadd.f32 %v1112, %v966
    %v1114 = vadd.f32 %v1113, %v976
    %v1115 = vrot.slane %v1114, 4
    %v1116 = vadd.f32 %v1114, %v1115
    %v1117 = vrot.slane %v1116, 2
    %v1118 = vadd.f32 %v1116, %v1117
    %v1119 = vrot.slane %v1118, 1
    %v1120 = vadd.f32 %v1118, %v1119
    %v1121 = vadd.f32 %v348, %v358
    %v1122 = vadd.f32 %v1121, %v368
    %v1123 = vadd.f32 %v1122, %v378
    %v1124 = vadd.f32 %v1123, %v388
    %v1125 = vadd.f32 %v1124, %v398
    %v1126 = vadd.f32 %v1125, %v408
    %v1127 = vadd.f32 %v1126, %v418
    %v1128 = vadd.f32 %v1127, %v428
    %v1129 = vadd.f32 %v1128, %v438
    %v1130 = vadd.f32 %v1129, %v448
    %v1131 = vadd.f32 %v1130, %v458
    %v1132 = vadd.f32 %v1131, %v468
    %v1133 = vadd.f32 %v1132, %v478
    %v1134 = vadd.f32 %v1133, %v488
    %v1135 = vadd.f32 %v1134, %v498
    %v1136 = vadd.f32 %v1135, %v508
    %v1137 = vadd.f32 %v1136, %v518
    %v1138 = vadd.f32 %v1137, %v528
    %v1139 = vadd.f32 %v1138, %v538
    %v1140 = vadd.f32 %v1139, %v548
    %v1141 = vadd.f32 %v1140, %v558
    %v1142 = vadd.f32 %v1141, %v568
    %v1143 = vadd.f32 %v1142, %v578
    %v1144 = vadd.f32 %v1143, %v588
    %v1145 = vadd.f32 %v1144, %v598
    %v1146 = vadd.f32 %v1145, %v608
    %v1147 = vadd.f32 %v1146, %v618
    %v1148 = vadd.f32 %v1147, %v628
    %v1149 = vadd.f32 %v1148, %v638
    %v1150 = vadd.f32 %v1149, %v648
    %v1151 = vadd.f32 %v1150, %v658
    %v1152 = vadd.f32 %v1151, %v668
    %v1153 = vadd.f32 %v1152, %v678
    %v1154 = vadd.f32 %v1153, %v688
    %v1155 = vadd.f32 %v1154, %v698
    %v1156 = vadd.f32 %v1155, %v708
    %v1157 = vadd.f32 %v1156, %v718
    %v1158 = vadd.f32 %v1157, %v728
    %v1159 = vadd.f32 %v1158, %v738
    %v1160 = vadd.f32 %v1159, %v748
    %v1161 = vadd.f32 %v1160, %v758
    %v1162 = vadd.f32 %v1161, %v768
    %v1163 = vadd.f32 %v1162, %v778
    %v1164 = vadd.f32 %v1163, %v788
    %v1165 = vadd.f32 %v1164, %v798
    %v1166 = vadd.f32 %v1165, %v808
    %v1167 = vadd.f32 %v1166, %v818
    %v1168 = vadd.f32 %v1167, %v828
    %v1169 = vadd.f32 %v1168, %v838
    %v1170 = vadd.f32 %v1169, %v848
    %v1171 = vadd.f32 %v1170, %v858
    %v1172 = vadd.f32 %v1171, %v868
    %v1173 = vadd.f32 %v1172, %v878
    %v1174 = vadd.f32 %v1173, %v888
    %v1175 = vadd.f32 %v1174, %v898
    %v1176 = vadd.f32 %v1175, %v908
    %v1177 = vadd.f32 %v1176, %v918
    %v1178 = vadd.f32 %v1177, %v928
    %v1179 = vadd.f32 %v1178, %v938
    %v1180 = vadd.f32 %v1179, %v948
    %v1181 = vadd.f32 %v1180, %v958
    %v1182 = vadd.f32 %v1181, %v968
    %v1183 = vadd.f32 %v1182, %v978
    %v1184 = vrot.slane %v1183, 4
    %v1185 = vadd.f32 %v1183, %v1184
    %v1186 = vrot.slane %v1185, 2
    %v1187 = vadd.f32 %v1185, %v1186
    %v1188 = vrot.slane %v1187, 1
    %v1189 = vadd.f32 %v1187, %v1188
    %v1190 = vadd.f32 %v350, %v360
    %v1191 = vadd.f32 %v1190, %v370
    %v1192 = vadd.f32 %v1191, %v380
    %v1193 = vadd.f32 %v1192, %v390
    %v1194 = vadd.f32 %v1193, %v400
    %v1195 = vadd.f32 %v1194, %v410
    %v1196 = vadd.f32 %v1195, %v420
    %v1197 = vadd.f32 %v1196, %v430
    %v1198 = vadd.f32 %v1197, %v440
    %v1199 = vadd.f32 %v1198, %v450
    %v1200 = vadd.f32 %v1199, %v460
    %v1201 = vadd.f32 %v1200, %v470
    %v1202 = vadd.f32 %v1201, %v480
    %v1203 = vadd.f32 %v1202, %v490
    %v1204 = vadd.f32 %v1203, %v500
    %v1205 = vadd.f32 %v1204, %v510
    %v1206 = vadd.f32 %v1205, %v520
    %v1207 = vadd.f32 %v1206, %v530
    %v1208 = vadd.f32 %v1207, %v540
    %v1209 = vadd.f32 %v1208, %v550
    %v1210 = vadd.f32 %v1209, %v560
    %v1211 = vadd.f32 %v1210, %v570
    %v1212 = vadd.f32 %v1211, %v580
    %v1213 = vadd.f32 %v1212, %v590
    %v1214 = vadd.f32 %v1213, %v600
    %v1215 = vadd.f32 %v1214, %v610
    %v1216 = vadd.f32 %v1215, %v620
    %v1217 = vadd.f32 %v1216, %v630
    %v1218 = vadd.f32 %v1217, %v640
    %v1219 = vadd.f32 %v1218, %v650
    %v1220 = vadd.f32 %v1219, %v660
    %v1221 = vadd.f32 %v1220, %v670
    %v1222 = vadd.f32 %v1221, %v680
    %v1223 = vadd.f32 %v1222, %v690
    %v1224 = vadd.f32 %v1223, %v700
    %v1225 = vadd.f32 %v1224, %v710
    %v1226 = vadd.f32 %v1225, %v720
    %v1227 = vadd.f32 %v1226, %v730
    %v1228 = vadd.f32 %v1227, %v740
    %v1229 = vadd.f32 %v1228, %v750
    %v1230 = vadd.f32 %v1229, %v760
    %v1231 = vadd.f32 %v1230, %v770
    %v1232 = vadd.f32 %v1231, %v780
    %v1233 = vadd.f32 %v1232, %v790
    %v1234 = vadd.f32 %v1233, %v800
    %v1235 = vadd.f32 %v1234, %v810
    %v1236 = vadd.f32 %v1235, %v820
    %v1237 = vadd.f32 %v1236, %v830
    %v1238 = vadd.f32 %v1237, %v840
    %v1239 = vadd.f32 %v1238, %v850
    %v1240 = vadd.f32 %v1239, %v860
    %v1241 = vadd.f32 %v1240, %v870
    %v1242 = vadd.f32 %v1241, %v880
    %v1243 = vadd.f32 %v1242, %v890
    %v1244 = vadd.f32 %v1243, %v900
    %v1245 = vadd.f32 %v1244, %v910
    %v1246 = vadd.f32 %v1245, %v920
    %v1247 = vadd.f32 %v1246, %v930
    %v1248 = vadd.f32 %v1247, %v940
    %v1249 = vadd.f32 %v1248, %v950
    %v1250 = vadd.f32 %v1249, %v960
    %v1251 = vadd.f32 %v1250, %v970
    %v1252 = vadd.f32 %v1251, %v980
    %v1253 = vrot.slane %v1252, 4
    %v1254 = vadd.f32 %v1252, %v1253
    %v1255 = vrot.slane %v1254, 2
    %v1256 = vadd.f32 %v1254, %v1255
    %v1257 = vrot.slane %v1256, 1
    %v1258 = vadd.f32 %v1256, %v1257
    %v1259 = vadd.f32 %v352, %v362
    %v1260 = vadd.f32 %v1259, %v372
    %v1261 = vadd.f32 %v1260, %v382
    %v1262 = vadd.f32 %v1261, %v392
    %v1263 = vadd.f32 %v1262, %v402
    %v1264 = vadd.f32 %v1263, %v412
    %v1265 = vadd.f32 %v1264, %v422
    %v1266 = vadd.f32 %v1265, %v432
    %v1267 = vadd.f32 %v1266, %v442
    %v1268 = vadd.f32 %v1267, %v452
    %v1269 = vadd.f32 %v1268, %v462
    %v1270 = vadd.f32 %v1269, %v472
    %v1271 = vadd.f32 %v1270, %v482
    %v1272 = vadd.f32 %v1271, %v492
    %v1273 = vadd.f32 %v1272, %v502
    %v1274 = vadd.f32 %v1273, %v512
    %v1275 = vadd.f32 %v1274, %v522
    %v1276 = vadd.f32 %v1275, %v532
    %v1277 = vadd.f32 %v1276, %v542
    %v1278 = vadd.f32 %v1277, %v552
    %v1279 = vadd.f32 %v1278, %v562
    %v1280 = vadd.f32 %v1279, %v572
    %v1281 = vadd.f32 %v1280, %v582
    %v1282 = vadd.f32 %v1281, %v592
    %v1283 = vadd.f32 %v1282, %v602
    %v1284 = vadd.f32 %v1283, %v612
    %v1285 = vadd.f32 %v1284, %v622
    %v1286 = vadd.f32 %v1285, %v632
    %v1287 = vadd.f32 %v1286, %v642
    %v1288 = vadd.f32 %v1287, %v652
    %v1289 = vadd.f32 %v1288, %v662
    %v1290 = vadd.f32 %v1289, %v672
    %v1291 = vadd.f32 %v1290, %v682
    %v1292 = vadd.f32 %v1291, %v692
    %v1293 = vadd.f32 %v1292, %v702
    %v1294 = vadd.f32 %v1293, %v712
    %v1295 = vadd.f32 %v1294, %v722
    %v1296 = vadd.f32 %v1295, %v732
    %v1297 = vadd.f32 %v1296, %v742
    %v1298 = vadd.f32 %v1297, %v752
    %v1299 = vadd.f32 %v1298, %v762
    %v1300 = vadd.f32 %v1299, %v772
    %v1301 = vadd.f32 %v1300, %v782
    %v1302 = vadd.f32 %v1301, %v792
    %v1303 = vadd.f32 %v1302, %v802
    %v1304 = vadd.f32 %v1303, %v812
    %v1305 = vadd.f32 %v1304, %v822
    %v1306 = vadd.f32 %v1305, %v832
    %v1307 = vadd.f32 %v1306, %v842
    %v1308 = vadd.f32 %v1307, %v852
    %v1309 = vadd.f32 %v1308, %v862
    %v1310 = vadd.f32 %v1309, %v872
    %v1311 = vadd.f32 %v1310, %v882
    %v1312 = vadd.f32 %v1311, %v892
    %v1313 = vadd.f32 %v1312, %v902
    %v1314 = vadd.f32 %v1313, %v912
    %v1315 = vadd.f32 %v1314, %v922
    %v1316 = vadd.f32 %v1315, %v932
    %v1317 = vadd.f32 %v1316, %v942
    %v1318 = vadd.f32 %v1317, %v952
    %v1319 = vadd.f32 %v1318, %v962
    %v1320 = vadd.f32 %v1319, %v972
    %v1321 = vadd.f32 %v1320, %v982
    %v1322 = vrot.slane %v1321, 4
    %v1323 = vadd.f32 %v1321, %v1322
    %v1324 = vrot.slane %v1323, 2
    %v1325 = vadd.f32 %v1323, %v1324
    %v1326 = vrot.slane %v1325, 1
    %v1327 = vadd.f32 %v1325, %v1326
    %v1328 = vrcp.pop %v1051
    %v1329 = vmul.f32 1.0, %v1328
    %v1330 = vrcp.pop %v1120
    %v1331 = vmul.f32 1.0, %v1330
    %v1332 = vrcp.pop %v1189
    %v1333 = vmul.f32 1.0, %v1332
    %v1334 = vrcp.pop %v1258
    %v1335 = vmul.f32 1.0, %v1334
    %v1336 = vrcp.pop %v1327
    %v1337 = vmul.f32 1.0, %v1336
    %v1338 = vmul.f32 %v344, %v1329
    %v1339 = vmul.f32 %v346, %v1331
    %v1340 = vmul.f32 %v348, %v1333
    %v1341 = vmul.f32 %v350, %v1335
    %v1342 = vmul.f32 %v352, %v1337
    %v1343 = vmul.f32 %v354, %v1329
    %v1344 = vmul.f32 %v356, %v1331
    %v1345 = vmul.f32 %v358, %v1333
    %v1346 = vmul.f32 %v360, %v1335
    %v1347 = vmul.f32 %v362, %v1337
    %v1348 = vmul.f32 %v364, %v1329
    %v1349 = vmul.f32 %v366, %v1331
    %v1350 = vmul.f32 %v368, %v1333
    %v1351 = vmul.f32 %v370, %v1335
    %v1352 = vmul.f32 %v372, %v1337
    %v1353 = vmul.f32 %v374, %v1329
    %v1354 = vmul.f32 %v376, %v1331
    %v1355 = vmul.f32 %v378, %v1333
    %v1356 = vmul.f32 %v380, %v1335
    %v1357 = vmul.f32 %v382, %v1337
    %v1358 = vmul.f32 %v384, %v1329
    %v1359 = vmul.f32 %v386, %v1331
    %v1360 = vmul.f32 %v388, %v1333
    %v1361 = vmul.f32 %v390, %v1335
    %v1362 = vmul.f32 %v392, %v1337
    %v1363 = vmul.f32 %v394, %v1329
    %v1364 = vmul.f32 %v396, %v1331
    %v1365 = vmul.f32 %v398, %v1333
    %v1366 = vmul.f32 %v400, %v1335
    %v1367 = vmul.f32 %v402, %v1337
    %v1368 = vmul.f32 %v404, %v1329
    %v1369 = vmul.f32 %v406, %v1331
    %v1370 = vmul.f32 %v408, %v1333
    %v1371 = vmul.f32 %v410, %v1335
    %v1372 = vmul.f32 %v412, %v1337
    %v1373 = vmul.f32 %v414, %v1329
    %v1374 = vmul.f32 %v416, %v1331
    %v1375 = vmul.f32 %v418, %v1333
    %v1376 = vmul.f32 %v420, %v1335
    %v1377 = vmul.f32 %v422, %v1337
    %v1378 = vmul.f32 %v424, %v1329
    %v1379 = vmul.f32 %v426, %v1331
    %v1380 = vmul.f32 %v428, %v1333
    %v1381 = vmul.f32 %v430, %v1335
    %v1382 = vmul.f32 %v432, %v1337
    %v1383 = vmul.f32 %v434, %v1329
    %v1384 = vmul.f32 %v436, %v1331
    %v1385 = vmul.f32 %v438, %v1333
    %v1386 = vmul.f32 %v440, %v1335
    %v1387 = vmul.f32 %v442, %v1337
    %v1388 = vmul.f32 %v444, %v1329
    %v1389 = vmul.f32 %v446, %v1331
    %v1390 = vmul.f32 %v448, %v1333
    %v1391 = vmul.f32 %v450, %v1335
    %v1392 = vmul.f32 %v452, %v1337
    %v1393 = vmul.f32 %v454, %v1329
    %v1394 = vmul.f32 %v456, %v1331
    %v1395 = vmul.f32 %v458, %v1333
    %v1396 = vmul.f32 %v460, %v1335
    %v1397 = vmul.f32 %v462, %v1337
    %v1398 = vmul.f32 %v464, %v1329
    %v1399 = vmul.f32 %v466, %v1331
    %v1400 = vmul.f32 %v468, %v1333
    %v1401 = vmul.f32 %v470, %v1335
    %v1402 = vmul.f32 %v472, %v1337
    %v1403 = vmul.f32 %v474, %v1329
    %v1404 = vmul.f32 %v476, %v1331
    %v1405 = vmul.f32 %v478, %v1333
    %v1406 = vmul.f32 %v480, %v1335
    %v1407 = vmul.f32 %v482, %v1337
    %v1408 = vmul.f32 %v484, %v1329
    %v1409 = vmul.f32 %v486, %v1331
    %v1410 = vmul.f32 %v488, %v1333
    %v1411 = vmul.f32 %v490, %v1335
    %v1412 = vmul.f32 %v492, %v1337
    %v1413 = vmul.f32 %v494, %v1329
    %v1414 = vmul.f32 %v496, %v1331
    %v1415 = vmul.f32 %v498, %v1333
    %v1416 = vmul.f32 %v500, %v1335
    %v1417 = vmul.f32 %v502, %v1337
    %v1418 = vmul.f32 %v504, %v1329
    %v1419 = vmul.f32 %v506, %v1331
    %v1420 = vmul.f32 %v508, %v1333
    %v1421 = vmul.f32 %v510, %v1335
    %v1422 = vmul.f32 %v512, %v1337
    %v1423 = vmul.f32 %v514, %v1329
    %v1424 = vmul.f32 %v516, %v1331
    %v1425 = vmul.f32 %v518, %v1333
    %v1426 = vmul.f32 %v520, %v1335
    %v1427 = vmul.f32 %v522, %v1337
    %v1428 = vmul.f32 %v524, %v1329
    %v1429 = vmul.f32 %v526, %v1331
    %v1430 = vmul.f32 %v528, %v1333
    %v1431 = vmul.f32 %v530, %v1335
    %v1432 = vmul.f32 %v532, %v1337
    %v1433 = vmul.f32 %v534, %v1329
    %v1434 = vmul.f32 %v536, %v1331
    %v1435 = vmul.f32 %v538, %v1333
    %v1436 = vmul.f32 %v540, %v1335
    %v1437 = vmul.f32 %v542, %v1337
    %v1438 = vmul.f32 %v544, %v1329
    %v1439 = vmul.f32 %v546, %v1331
    %v1440 = vmul.f32 %v548, %v1333
    %v1441 = vmul.f32 %v550, %v1335
    %v1442 = vmul.f32 %v552, %v1337
    %v1443 = vmul.f32 %v554, %v1329
    %v1444 = vmul.f32 %v556, %v1331
    %v1445 = vmul.f32 %v558, %v1333
    %v1446 = vmul.f32 %v560, %v1335
    %v1447 = vmul.f32 %v562, %v1337
    %v1448 = vmul.f32 %v564, %v1329
    %v1449 = vmul.f32 %v566, %v1331
    %v1450 = vmul.f32 %v568, %v1333
    %v1451 = vmul.f32 %v570, %v1335
    %v1452 = vmul.f32 %v572, %v1337
    %v1453 = vmul.f32 %v574, %v1329
    %v1454 = vmul.f32 %v576, %v1331
    %v1455 = vmul.f32 %v578, %v1333
    %v1456 = vmul.f32 %v580, %v1335
    %v1457 = vmul.f32 %v582, %v1337
    %v1458 = vmul.f32 %v584, %v1329
    %v1459 = vmul.f32 %v586, %v1331
    %v1460 = vmul.f32 %v588, %v1333
    %v1461 = vmul.f32 %v590, %v1335
    %v1462 = vmul.f32 %v592, %v1337
    %v1463 = vmul.f32 %v594, %v1329
    %v1464 = vmul.f32 %v596, %v1331
    %v1465 = vmul.f32 %v598, %v1333
    %v1466 = vmul.f32 %v600, %v1335
    %v1467 = vmul.f32 %v602, %v1337
    %v1468 = vmul.f32 %v604, %v1329
    %v1469 = vmul.f32 %v606, %v1331
    %v1470 = vmul.f32 %v608, %v1333
    %v1471 = vmul.f32 %v610, %v1335
    %v1472 = vmul.f32 %v612, %v1337
    %v1473 = vmul.f32 %v614, %v1329
    %v1474 = vmul.f32 %v616, %v1331
    %v1475 = vmul.f32 %v618, %v1333
    %v1476 = vmul.f32 %v620, %v1335
    %v1477 = vmul.f32 %v622, %v1337
    %v1478 = vmul.f32 %v624, %v1329
    %v1479 = vmul.f32 %v626, %v1331
    %v1480 = vmul.f32 %v628, %v1333
    %v1481 = vmul.f32 %v630, %v1335
    %v1482 = vmul.f32 %v632, %v1337
    %v1483 = vmul.f32 %v634, %v1329
    %v1484 = vmul.f32 %v636, %v1331
    %v1485 = vmul.f32 %v638, %v1333
    %v1486 = vmul.f32 %v640, %v1335
    %v1487 = vmul.f32 %v642, %v1337
    %v1488 = vmul.f32 %v644, %v1329
    %v1489 = vmul.f32 %v646, %v1331
    %v1490 = vmul.f32 %v648, %v1333
    %v1491 = vmul.f32 %v650, %v1335
    %v1492 = vmul.f32 %v652, %v1337
    %v1493 = vmul.f32 %v654, %v1329
    %v1494 = vmul.f32 %v656, %v1331
    %v1495 = vmul.f32 %v658, %v1333
    %v1496 = vmul.f32 %v660, %v1335
    %v1497 = vmul.f32 %v662, %v1337
    %v1498 = vmul.f32 %v664, %v1329
    %v1499 = vmul.f32 %v666, %v1331
    %v1500 = vmul.f32 %v668, %v1333
    %v1501 = vmul.f32 %v670, %v1335
    %v1502 = vmul.f32 %v672, %v1337
    %v1503 = vmul.f32 %v674, %v1329
    %v1504 = vmul.f32 %v676, %v1331
    %v1505 = vmul.f32 %v678, %v1333
    %v1506 = vmul.f32 %v680, %v1335
    %v1507 = vmul.f32 %v682, %v1337
    %v1508 = vmul.f32 %v684, %v1329
    %v1509 = vmul.f32 %v686, %v1331
    %v1510 = vmul.f32 %v688, %v1333
    %v1511 = vmul.f32 %v690, %v1335
    %v1512 = vmul.f32 %v692, %v1337
    %v1513 = vmul.f32 %v694, %v1329
    %v1514 = vmul.f32 %v696, %v1331
    %v1515 = vmul.f32 %v698, %v1333
    %v1516 = vmul.f32 %v700, %v1335
    %v1517 = vmul.f32 %v702, %v1337
    %v1518 = vmul.f32 %v704, %v1329
    %v1519 = vmul.f32 %v706, %v1331
    %v1520 = vmul.f32 %v708, %v1333
    %v1521 = vmul.f32 %v710, %v1335
    %v1522 = vmul.f32 %v712, %v1337
    %v1523 = vmul.f32 %v714, %v1329
    %v1524 = vmul.f32 %v716, %v1331
    %v1525 = vmul.f32 %v718, %v1333
    %v1526 = vmul.f32 %v720, %v1335
    %v1527 = vmul.f32 %v722, %v1337
    %v1528 = vmul.f32 %v724, %v1329
    %v1529 = vmul.f32 %v726, %v1331
    %v1530 = vmul.f32 %v728, %v1333
    %v1531 = vmul.f32 %v730, %v1335
    %v1532 = vmul.f32 %v732, %v1337
    %v1533 = vmul.f32 %v734, %v1329
    %v1534 = vmul.f32 %v736, %v1331
    %v1535 = vmul.f32 %v738, %v1333
    %v1536 = vmul.f32 %v740, %v1335
    %v1537 = vmul.f32 %v742, %v1337
    %v1538 = vmul.f32 %v744, %v1329
    %v1539 = vmul.f32 %v746, %v1331
    %v1540 = vmul.f32 %v748, %v1333
    %v1541 = vmul.f32 %v750, %v1335
    %v1542 = vmul.f32 %v752, %v1337
    %v1543 = vmul.f32 %v754, %v1329
    %v1544 = vmul.f32 %v756, %v1331
    %v1545 = vmul.f32 %v758, %v1333
    %v1546 = vmul.f32 %v760, %v1335
    %v1547 = vmul.f32 %v762, %v1337
    %v1548 = vmul.f32 %v764, %v1329
    %v1549 = vmul.f32 %v766, %v1331
    %v1550 = vmul.f32 %v768, %v1333
    %v1551 = vmul.f32 %v770, %v1335
    %v1552 = vmul.f32 %v772, %v1337
    %v1553 = vmul.f32 %v774, %v1329
    %v1554 = vmul.f32 %v776, %v1331
    %v1555 = vmul.f32 %v778, %v1333
    %v1556 = vmul.f32 %v780, %v1335
    %v1557 = vmul.f32 %v782, %v1337
    %v1558 = vmul.f32 %v784, %v1329
    %v1559 = vmul.f32 %v786, %v1331
    %v1560 = vmul.f32 %v788, %v1333
    %v1561 = vmul.f32 %v790, %v1335
    %v1562 = vmul.f32 %v792, %v1337
    %v1563 = vmul.f32 %v794, %v1329
    %v1564 = vmul.f32 %v796, %v1331
    %v1565 = vmul.f32 %v798, %v1333
    %v1566 = vmul.f32 %v800, %v1335
    %v1567 = vmul.f32 %v802, %v1337
    %v1568 = vmul.f32 %v804, %v1329
    %v1569 = vmul.f32 %v806, %v1331
    %v1570 = vmul.f32 %v808, %v1333
    %v1571 = vmul.f32 %v810, %v1335
    %v1572 = vmul.f32 %v812, %v1337
    %v1573 = vmul.f32 %v814, %v1329
    %v1574 = vmul.f32 %v816, %v1331
    %v1575 = vmul.f32 %v818, %v1333
    %v1576 = vmul.f32 %v820, %v1335
    %v1577 = vmul.f32 %v822, %v1337
    %v1578 = vmul.f32 %v824, %v1329
    %v1579 = vmul.f32 %v826, %v1331
    %v1580 = vmul.f32 %v828, %v1333
    %v1581 = vmul.f32 %v830, %v1335
    %v1582 = vmul.f32 %v832, %v1337
    %v1583 = vmul.f32 %v834, %v1329
    %v1584 = vmul.f32 %v836, %v1331
    %v1585 = vmul.f32 %v838, %v1333
    %v1586 = vmul.f32 %v840, %v1335
    %v1587 = vmul.f32 %v842, %v1337
    %v1588 = vmul.f32 %v844, %v1329
    %v1589 = vmul.f32 %v846, %v1331
    %v1590 = vmul.f32 %v848, %v1333
    %v1591 = vmul.f32 %v850, %v1335
    %v1592 = vmul.f32 %v852, %v1337
    %v1593 = vmul.f32 %v854, %v1329
    %v1594 = vmul.f32 %v856, %v1331
    %v1595 = vmul.f32 %v858, %v1333
    %v1596 = vmul.f32 %v860, %v1335
    %v1597 = vmul.f32 %v862, %v1337
    %v1598 = vmul.f32 %v864, %v1329
    %v1599 = vmul.f32 %v866, %v1331
    %v1600 = vmul.f32 %v868, %v1333
    %v1601 = vmul.f32 %v870, %v1335
    %v1602 = vmul.f32 %v872, %v1337
    %v1603 = vmul.f32 %v874, %v1329
    %v1604 = vmul.f32 %v876, %v1331
    %v1605 = vmul.f32 %v878, %v1333
    %v1606 = vmul.f32 %v880, %v1335
    %v1607 = vmul.f32 %v882, %v1337
    %v1608 = vmul.f32 %v884, %v1329
    %v1609 = vmul.f32 %v886, %v1331
    %v1610 = vmul.f32 %v888, %v1333
    %v1611 = vmul.f32 %v890, %v1335
    %v1612 = vmul.f32 %v892, %v1337
    %v1613 = vmul.f32 %v894, %v1329
    %v1614 = vmul.f32 %v896, %v1331
    %v1615 = vmul.f32 %v898, %v1333
    %v1616 = vmul.f32 %v900, %v1335
    %v1617 = vmul.f32 %v902, %v1337
    %v1618 = vmul.f32 %v904, %v1329
    %v1619 = vmul.f32 %v906, %v1331
    %v1620 = vmul.f32 %v908, %v1333
    %v1621 = vmul.f32 %v910, %v1335
    %v1622 = vmul.f32 %v912, %v1337
    %v1623 = vmul.f32 %v914, %v1329
    %v1624 = vmul.f32 %v916, %v1331
    %v1625 = vmul.f32 %v918, %v1333
    %v1626 = vmul.f32 %v920, %v1335
    %v1627 = vmul.f32 %v922, %v1337
    %v1628 = vmul.f32 %v924, %v1329
    %v1629 = vmul.f32 %v926, %v1331
    %v1630 = vmul.f32 %v928, %v1333
    %v1631 = vmul.f32 %v930, %v1335
    %v1632 = vmul.f32 %v932, %v1337
    %v1633 = vmul.f32 %v934, %v1329
    %v1634 = vmul.f32 %v936, %v1331
    %v1635 = vmul.f32 %v938, %v1333
    %v1636 = vmul.f32 %v940, %v1335
    %v1637 = vmul.f32 %v942, %v1337
    %v1638 = vmul.f32 %v944, %v1329
    %v1639 = vmul.f32 %v946, %v1331
    %v1640 = vmul.f32 %v948, %v1333
    %v1641 = vmul.f32 %v950, %v1335
    %v1642 = vmul.f32 %v952, %v1337
    %v1643 = vmul.f32 %v954, %v1329
    %v1644 = vmul.f32 %v956, %v1331
    %v1645 = vmul.f32 %v958, %v1333
    %v1646 = vmul.f32 %v960, %v1335
    %v1647 = vmul.f32 %v962, %v1337
    %v1648 = vmul.f32 %v964, %v1329
    %v1649 = vmul.f32 %v966, %v1331
    %v1650 = vmul.f32 %v968, %v1333
    %v1651 = vmul.f32 %v970, %v1335
    %v1652 = vmul.f32 %v972, %v1337
    %v1653 = vmul.f32 %v974, %v1329
    %v1654 = vmul.f32 %v976, %v1331
    %v1655 = vmul.f32 %v978, %v1333
    %v1656 = vmul.f32 %v980, %v1335
    %v1657 = vmul.f32 %v982, %v1337
    %1658 = vst [vmem:[#allocation5] sm:$0xff] %v1338
    %1659 = vst [vmem:[#allocation5 + $0x8] sm:$0xff] %v1339
    %1660 = vst [vmem:[#allocation5 + $0x10] sm:$0xff] %v1340
    %1661 = vst [vmem:[#allocation5 + $0x18] sm:$0xff] %v1341
    %1662 = vst [vmem:[#allocation5 + $0x20] sm:$0xff] %v1342
    %1663 = vst [vmem:[#allocation5 + $0x28] sm:$0xff] %v1343
    %1664 = vst [vmem:[#allocation5 + $0x30] sm:$0xff] %v1344
    %1665 = vst [vmem:[#allocation5 + $0x38] sm:$0xff] %v1345
    %1666 = vst [vmem:[#allocation5 + $0x40] sm:$0xff] %v1346
    %1667 = vst [vmem:[#allocation5 + $0x48] sm:$0xff] %v1347
    %1668 = vst [vmem:[#allocation5 + $0x50] sm:$0xff] %v1348
    %1669 = vst [vmem:[#allocation5 + $0x58] sm:$0xff] %v1349
    %1670 = vst [vmem:[#allocation5 + $0x60] sm:$0xff] %v1350
    %1671 = vst [vmem:[#allocation5 + $0x68] sm:$0xff] %v1351
    %1672 = vst [vmem:[#allocation5 + $0x70] sm:$0xff] %v1352
    %1673 = vst [vmem:[#allocation5 + $0x78] sm:$0xff] %v1353
    %1674 = vst [vmem:[#allocation5 + $0x80] sm:$0xff] %v1354
    %1675 = vst [vmem:[#allocation5 + $0x88] sm:$0xff] %v1355
    %1676 = vst [vmem:[#allocation5 + $0x90] sm:$0xff] %v1356
    %1677 = vst [vmem:[#allocation5 + $0x98] sm:$0xff] %v1357
    %1678 = vst [vmem:[#allocation5 + $0xa0] sm:$0xff] %v1358
    %1679 = vst [vmem:[#allocation5 + $0xa8] sm:$0xff] %v1359
    %1680 = vst [vmem:[#allocation5 + $0xb0] sm:$0xff] %v1360
    %1681 = vst [vmem:[#allocation5 + $0xb8] sm:$0xff] %v1361
    %1682 = vst [vmem:[#allocation5 + $0xc0] sm:$0xff] %v1362
    %1683 = vst [vmem:[#allocation5 + $0xc8] sm:$0xff] %v1363
    %1684 = vst [vmem:[#allocation5 + $0xd0] sm:$0xff] %v1364
    %1685 = vst [vmem:[#allocation5 + $0xd8] sm:$0xff] %v1365
    %1686 = vst [vmem:[#allocation5 + $0xe0] sm:$0xff] %v1366
    %1687 = vst [vmem:[#allocation5 + $0xe8] sm:$0xff] %v1367
    %1688 = vst [vmem:[#allocation5 + $0xf0] sm:$0xff] %v1368
    %1689 = vst [vmem:[#allocation5 + $0xf8] sm:$0xff] %v1369
    %1690 = vst [vmem:[#allocation5 + $0x100] sm:$0xff] %v1370
    %1691 = vst [vmem:[#allocation5 + $0x108] sm:$0xff] %v1371
    %1692 = vst [vmem:[#allocation5 + $0x110] sm:$0xff] %v1372
    %1693 = vst [vmem:[#allocation5 + $0x118] sm:$0xff] %v1373
    %1694 = vst [vmem:[#allocation5 + $0x120] sm:$0xff] %v1374
    %1695 = vst [vmem:[#allocation5 + $0x128] sm:$0xff] %v1375
    %1696 = vst [vmem:[#allocation5 + $0x130] sm:$0xff] %v1376
    %1697 = vst [vmem:[#allocation5 + $0x138] sm:$0xff] %v1377
    %1698 = vst [vmem:[#allocation5 + $0x140] sm:$0xff] %v1378
    %1699 = vst [vmem:[#allocation5 + $0x148] sm:$0xff] %v1379
    %1700 = vst [vmem:[#allocation5 + $0x150] sm:$0xff] %v1380
    %1701 = vst [vmem:[#allocation5 + $0x158] sm:$0xff] %v1381
    %1702 = vst [vmem:[#allocation5 + $0x160] sm:$0xff] %v1382
    %1703 = vst [vmem:[#allocation5 + $0x168] sm:$0xff] %v1383
    %1704 = vst [vmem:[#allocation5 + $0x170] sm:$0xff] %v1384
    %1705 = vst [vmem:[#allocation5 + $0x178] sm:$0xff] %v1385
    %1706 = vst [vmem:[#allocation5 + $0x180] sm:$0xff] %v1386
    %1707 = vst [vmem:[#allocation5 + $0x188] sm:$0xff] %v1387
    %1708 = vst [vmem:[#allocation5 + $0x190] sm:$0xff] %v1388
    %1709 = vst [vmem:[#allocation5 + $0x198] sm:$0xff] %v1389
    %1710 = vst [vmem:[#allocation5 + $0x1a0] sm:$0xff] %v1390
    %1711 = vst [vmem:[#allocation5 + $0x1a8] sm:$0xff] %v1391
    %1712 = vst [vmem:[#allocation5 + $0x1b0] sm:$0xff] %v1392
    %1713 = vst [vmem:[#allocation5 + $0x1b8] sm:$0xff] %v1393
    %1714 = vst [vmem:[#allocation5 + $0x1c0] sm:$0xff] %v1394
    %1715 = vst [vmem:[#allocation5 + $0x1c8] sm:$0xff] %v1395
    %1716 = vst [vmem:[#allocation5 + $0x1d0] sm:$0xff] %v1396
    %1717 = vst [vmem:[#allocation5 + $0x1d8] sm:$0xff] %v1397
    %1718 = vst [vmem:[#allocation5 + $0x1e0] sm:$0xff] %v1398
    %1719 = vst [vmem:[#allocation5 + $0x1e8] sm:$0xff] %v1399
    %1720 = vst [vmem:[#allocation5 + $0x1f0] sm:$0xff] %v1400
    %1721 = vst [vmem:[#allocation5 + $0x1f8] sm:$0xff] %v1401
    %1722 = vst [vmem:[#allocation5 + $0x200] sm:$0xff] %v1402
    %1723 = vst [vmem:[#allocation5 + $0x208] sm:$0xff] %v1403
    %1724 = vst [vmem:[#allocation5 + $0x210] sm:$0xff] %v1404
    %1725 = vst [vmem:[#allocation5 + $0x218] sm:$0xff] %v1405
    %1726 = vst [vmem:[#allocation5 + $0x220] sm:$0xff] %v1406
    %1727 = vst [vmem:[#allocation5 + $0x228] sm:$0xff] %v1407
    %1728 = vst [vmem:[#allocation5 + $0x230] sm:$0xff] %v1408
    %1729 = vst [vmem:[#allocation5 + $0x238] sm:$0xff] %v1409
    %1730 = vst [vmem:[#allocation5 + $0x240] sm:$0xff] %v1410
    %1731 = vst [vmem:[#allocation5 + $0x248] sm:$0xff] %v1411
    %1732 = vst [vmem:[#allocation5 + $0x250] sm:$0xff] %v1412
    %1733 = vst [vmem:[#allocation5 + $0x258] sm:$0xff] %v1413
    %1734 = vst [vmem:[#allocation5 + $0x260] sm:$0xff] %v1414
    %1735 = vst [vmem:[#allocation5 + $0x268] sm:$0xff] %v1415
    %1736 = vst [vmem:[#allocation5 + $0x270] sm:$0xff] %v1416
    %1737 = vst [vmem:[#allocation5 + $0x278] sm:$0xff] %v1417
    %1738 = vst [vmem:[#allocation5 + $0x280] sm:$0xff] %v1418
    %1739 = vst [vmem:[#allocation5 + $0x288] sm:$0xff] %v1419
    %1740 = vst [vmem:[#allocation5 + $0x290] sm:$0xff] %v1420
    %1741 = vst [vmem:[#allocation5 + $0x298] sm:$0xff] %v1421
    %1742 = vst [vmem:[#allocation5 + $0x2a0] sm:$0xff] %v1422
    %1743 = vst [vmem:[#allocation5 + $0x2a8] sm:$0xff] %v1423
    %1744 = vst [vmem:[#allocation5 + $0x2b0] sm:$0xff] %v1424
    %1745 = vst [vmem:[#allocation5 + $0x2b8] sm:$0xff] %v1425
    %1746 = vst [vmem:[#allocation5 + $0x2c0] sm:$0xff] %v1426
    %1747 = vst [vmem:[#allocation5 + $0x2c8] sm:$0xff] %v1427
    %1748 = vst [vmem:[#allocation5 + $0x2d0] sm:$0xff] %v1428
    %1749 = vst [vmem:[#allocation5 + $0x2d8] sm:$0xff] %v1429
    %1750 = vst [vmem:[#allocation5 + $0x2e0] sm:$0xff] %v1430
    %1751 = vst [vmem:[#allocation5 + $0x2e8] sm:$0xff] %v1431
    %1752 = vst [vmem:[#allocation5 + $0x2f0] sm:$0xff] %v1432
    %1753 = vst [vmem:[#allocation5 + $0x2f8] sm:$0xff] %v1433
    %1754 = vst [vmem:[#allocation5 + $0x300] sm:$0xff] %v1434
    %1755 = vst [vmem:[#allocation5 + $0x308] sm:$0xff] %v1435
    %1756 = vst [vmem:[#allocation5 + $0x310] sm:$0xff] %v1436
    %1757 = vst [vmem:[#allocation5 + $0x318] sm:$0xff] %v1437
    %1758 = vst [vmem:[#allocation5 + $0x320] sm:$0xff] %v1438
    %1759 = vst [vmem:[#allocation5 + $0x328] sm:$0xff] %v1439
    %1760 = vst [vmem:[#allocation5 + $0x330] sm:$0xff] %v1440
    %1761 = vst [vmem:[#allocation5 + $0x338] sm:$0xff] %v1441
    %1762 = vst [vmem:[#allocation5 + $0x340] sm:$0xff] %v1442
    %1763 = vst [vmem:[#allocation5 + $0x348] sm:$0xff] %v1443
    %1764 = vst [vmem:[#allocation5 + $0x350] sm:$0xff] %v1444
    %1765 = vst [vmem:[#allocation5 + $0x358] sm:$0xff] %v1445
    %1766 = vst [vmem:[#allocation5 + $0x360] sm:$0xff] %v1446
    %1767 = vst [vmem:[#allocation5 + $0x368] sm:$0xff] %v1447
    %1768 = vst [vmem:[#allocation5 + $0x370] sm:$0xff] %v1448
    %1769 = vst [vmem:[#allocation5 + $0x378] sm:$0xff] %v1449
    %1770 = vst [vmem:[#allocation5 + $0x380] sm:$0xff] %v1450
    %1771 = vst [vmem:[#allocation5 + $0x388] sm:$0xff] %v1451
    %1772 = vst [vmem:[#allocation5 + $0x390] sm:$0xff] %v1452
    %1773 = vst [vmem:[#allocation5 + $0x398] sm:$0xff] %v1453
    %1774 = vst [vmem:[#allocation5 + $0x3a0] sm:$0xff] %v1454
    %1775 = vst [vmem:[#allocation5 + $0x3a8] sm:$0xff] %v1455
    %1776 = vst [vmem:[#allocation5 + $0x3b0] sm:$0xff] %v1456
    %1777 = vst [vmem:[#allocation5 + $0x3b8] sm:$0xff] %v1457
    %1778 = vst [vmem:[#allocation5 + $0x3c0] sm:$0xff] %v1458
    %1779 = vst [vmem:[#allocation5 + $0x3c8] sm:$0xff] %v1459
    %1780 = vst [vmem:[#allocation5 + $0x3d0] sm:$0xff] %v1460
    %1781 = vst [vmem:[#allocation5 + $0x3d8] sm:$0xff] %v1461
    %1782 = vst [vmem:[#allocation5 + $0x3e0] sm:$0xff] %v1462
    %1783 = vst [vmem:[#allocation5 + $0x3e8] sm:$0xff] %v1463
    %1784 = vst [vmem:[#allocation5 + $0x3f0] sm:$0xff] %v1464
    %1785 = vst [vmem:[#allocation5 + $0x3f8] sm:$0xff] %v1465
    %1786 = vst [vmem:[#allocation5 + $0x400] sm:$0xff] %v1466
    %1787 = vst [vmem:[#allocation5 + $0x408] sm:$0xff] %v1467
    %1788 = vst [vmem:[#allocation5 + $0x410] sm:$0xff] %v1468
    %1789 = vst [vmem:[#allocation5 + $0x418] sm:$0xff] %v1469
    %1790 = vst [vmem:[#allocation5 + $0x420] sm:$0xff] %v1470
    %1791 = vst [vmem:[#allocation5 + $0x428] sm:$0xff] %v1471
    %1792 = vst [vmem:[#allocation5 + $0x430] sm:$0xff] %v1472
    %1793 = vst [vmem:[#allocation5 + $0x438] sm:$0xff] %v1473
    %1794 = vst [vmem:[#allocation5 + $0x440] sm:$0xff] %v1474
    %1795 = vst [vmem:[#allocation5 + $0x448] sm:$0xff] %v1475
    %1796 = vst [vmem:[#allocation5 + $0x450] sm:$0xff] %v1476
    %1797 = vst [vmem:[#allocation5 + $0x458] sm:$0xff] %v1477
    %1798 = vst [vmem:[#allocation5 + $0x460] sm:$0xff] %v1478
    %1799 = vst [vmem:[#allocation5 + $0x468] sm:$0xff] %v1479
    %1800 = vst [vmem:[#allocation5 + $0x470] sm:$0xff] %v1480
    %1801 = vst [vmem:[#allocation5 + $0x478] sm:$0xff] %v1481
    %1802 = vst [vmem:[#allocation5 + $0x480] sm:$0xff] %v1482
    %1803 = vst [vmem:[#allocation5 + $0x488] sm:$0xff] %v1483
    %1804 = vst [vmem:[#allocation5 + $0x490] sm:$0xff] %v1484
    %1805 = vst [vmem:[#allocation5 + $0x498] sm:$0xff] %v1485
    %1806 = vst [vmem:[#allocation5 + $0x4a0] sm:$0xff] %v1486
    %1807 = vst [vmem:[#allocation5 + $0x4a8] sm:$0xff] %v1487
    %1808 = vst [vmem:[#allocation5 + $0x4b0] sm:$0xff] %v1488
    %1809 = vst [vmem:[#allocation5 + $0x4b8] sm:$0xff] %v1489
    %1810 = vst [vmem:[#allocation5 + $0x4c0] sm:$0xff] %v1490
    %1811 = vst [vmem:[#allocation5 + $0x4c8] sm:$0xff] %v1491
    %1812 = vst [vmem:[#allocation5 + $0x4d0] sm:$0xff] %v1492
    %1813 = vst [vmem:[#allocation5 + $0x4d8] sm:$0xff] %v1493
    %1814 = vst [vmem:[#allocation5 + $0x4e0] sm:$0xff] %v1494
    %1815 = vst [vmem:[#allocation5 + $0x4e8] sm:$0xff] %v1495
    %1816 = vst [vmem:[#allocation5 + $0x4f0] sm:$0xff] %v1496
    %1817 = vst [vmem:[#allocation5 + $0x4f8] sm:$0xff] %v1497
    %1818 = vst [vmem:[#allocation5 + $0x500] sm:$0xff] %v1498
    %1819 = vst [vmem:[#allocation5 + $0x508] sm:$0xff] %v1499
    %1820 = vst [vmem:[#allocation5 + $0x510] sm:$0xff] %v1500
    %1821 = vst [vmem:[#allocation5 + $0x518] sm:$0xff] %v1501
    %1822 = vst [vmem:[#allocation5 + $0x520] sm:$0xff] %v1502
    %1823 = vst [vmem:[#allocation5 + $0x528] sm:$0xff] %v1503
    %1824 = vst [vmem:[#allocation5 + $0x530] sm:$0xff] %v1504
    %1825 = vst [vmem:[#allocation5 + $0x538] sm:$0xff] %v1505
    %1826 = vst [vmem:[#allocation5 + $0x540] sm:$0xff] %v1506
    %1827 = vst [vmem:[#allocation5 + $0x548] sm:$0xff] %v1507
    %1828 = vst [vmem:[#allocation5 + $0x550] sm:$0xff] %v1508
    %1829 = vst [vmem:[#allocation5 + $0x558] sm:$0xff] %v1509
    %1830 = vst [vmem:[#allocation5 + $0x560] sm:$0xff] %v1510
    %1831 = vst [vmem:[#allocation5 + $0x568] sm:$0xff] %v1511
    %1832 = vst [vmem:[#allocation5 + $0x570] sm:$0xff] %v1512
    %1833 = vst [vmem:[#allocation5 + $0x578] sm:$0xff] %v1513
    %1834 = vst [vmem:[#allocation5 + $0x580] sm:$0xff] %v1514
    %1835 = vst [vmem:[#allocation5 + $0x588] sm:$0xff] %v1515
    %1836 = vst [vmem:[#allocation5 + $0x590] sm:$0xff] %v1516
    %1837 = vst [vmem:[#allocation5 + $0x598] sm:$0xff] %v1517
    %1838 = vst [vmem:[#allocation5 + $0x5a0] sm:$0xff] %v1518
    %1839 = vst [vmem:[#allocation5 + $0x5a8] sm:$0xff] %v1519
    %1840 = vst [vmem:[#allocation5 + $0x5b0] sm:$0xff] %v1520
    %1841 = vst [vmem:[#allocation5 + $0x5b8] sm:$0xff] %v1521
    %1842 = vst [vmem:[#allocation5 + $0x5c0] sm:$0xff] %v1522
    %1843 = vst [vmem:[#allocation5 + $0x5c8] sm:$0xff] %v1523
    %1844 = vst [vmem:[#allocation5 + $0x5d0] sm:$0xff] %v1524
    %1845 = vst [vmem:[#allocation5 + $0x5d8] sm:$0xff] %v1525
    %1846 = vst [vmem:[#allocation5 + $0x5e0] sm:$0xff] %v1526
    %1847 = vst [vmem:[#allocation5 + $0x5e8] sm:$0xff] %v1527
    %1848 = vst [vmem:[#allocation5 + $0x5f0] sm:$0xff] %v1528
    %1849 = vst [vmem:[#allocation5 + $0x5f8] sm:$0xff] %v1529
    %1850 = vst [vmem:[#allocation5 + $0x600] sm:$0xff] %v1530
    %1851 = vst [vmem:[#allocation5 + $0x608] sm:$0xff] %v1531
    %1852 = vst [vmem:[#allocation5 + $0x610] sm:$0xff] %v1532
    %1853 = vst [vmem:[#allocation5 + $0x618] sm:$0xff] %v1533
    %1854 = vst [vmem:[#allocation5 + $0x620] sm:$0xff] %v1534
    %1855 = vst [vmem:[#allocation5 + $0x628] sm:$0xff] %v1535
    %1856 = vst [vmem:[#allocation5 + $0x630] sm:$0xff] %v1536
    %1857 = vst [vmem:[#allocation5 + $0x638] sm:$0xff] %v1537
    %1858 = vst [vmem:[#allocation5 + $0x640] sm:$0xff] %v1538
    %1859 = vst [vmem:[#allocation5 + $0x648] sm:$0xff] %v1539
    %1860 = vst [vmem:[#allocation5 + $0x650] sm:$0xff] %v1540
    %1861 = vst [vmem:[#allocation5 + $0x658] sm:$0xff] %v1541
    %1862 = vst [vmem:[#allocation5 + $0x660] sm:$0xff] %v1542
    %1863 = vst [vmem:[#allocation5 + $0x668] sm:$0xff] %v1543
    %1864 = vst [vmem:[#allocation5 + $0x670] sm:$0xff] %v1544
    %1865 = vst [vmem:[#allocation5 + $0x678] sm:$0xff] %v1545
    %1866 = vst [vmem:[#allocation5 + $0x680] sm:$0xff] %v1546
    %1867 = vst [vmem:[#allocation5 + $0x688] sm:$0xff] %v1547
    %1868 = vst [vmem:[#allocation5 + $0x690] sm:$0xff] %v1548
    %1869 = vst [vmem:[#allocation5 + $0x698] sm:$0xff] %v1549
    %1870 = vst [vmem:[#allocation5 + $0x6a0] sm:$0xff] %v1550
    %1871 = vst [vmem:[#allocation5 + $0x6a8] sm:$0xff] %v1551
    %1872 = vst [vmem:[#allocation5 + $0x6b0] sm:$0xff] %v1552
    %1873 = vst [vmem:[#allocation5 + $0x6b8] sm:$0xff] %v1553
    %1874 = vst [vmem:[#allocation5 + $0x6c0] sm:$0xff] %v1554
    %1875 = vst [vmem:[#allocation5 + $0x6c8] sm:$0xff] %v1555
    %1876 = vst [vmem:[#allocation5 + $0x6d0] sm:$0xff] %v1556
    %1877 = vst [vmem:[#allocation5 + $0x6d8] sm:$0xff] %v1557
    %1878 = vst [vmem:[#allocation5 + $0x6e0] sm:$0xff] %v1558
    %1879 = vst [vmem:[#allocation5 + $0x6e8] sm:$0xff] %v1559
    %1880 = vst [vmem:[#allocation5 + $0x6f0] sm:$0xff] %v1560
    %1881 = vst [vmem:[#allocation5 + $0x6f8] sm:$0xff] %v1561
    %1882 = vst [vmem:[#allocation5 + $0x700] sm:$0xff] %v1562
    %1883 = vst [vmem:[#allocation5 + $0x708] sm:$0xff] %v1563
    %1884 = vst [vmem:[#allocation5 + $0x710] sm:$0xff] %v1564
    %1885 = vst [vmem:[#allocation5 + $0x718] sm:$0xff] %v1565
    %1886 = vst [vmem:[#allocation5 + $0x720] sm:$0xff] %v1566
    %1887 = vst [vmem:[#allocation5 + $0x728] sm:$0xff] %v1567
    %1888 = vst [vmem:[#allocation5 + $0x730] sm:$0xff] %v1568
    %1889 = vst [vmem:[#allocation5 + $0x738] sm:$0xff] %v1569
    %1890 = vst [vmem:[#allocation5 + $0x740] sm:$0xff] %v1570
    %1891 = vst [vmem:[#allocation5 + $0x748] sm:$0xff] %v1571
    %1892 = vst [vmem:[#allocation5 + $0x750] sm:$0xff] %v1572
    %1893 = vst [vmem:[#allocation5 + $0x758] sm:$0xff] %v1573
    %1894 = vst [vmem:[#allocation5 + $0x760] sm:$0xff] %v1574
    %1895 = vst [vmem:[#allocation5 + $0x768] sm:$0xff] %v1575
    %1896 = vst [vmem:[#allocation5 + $0x770] sm:$0xff] %v1576
    %1897 = vst [vmem:[#allocation5 + $0x778] sm:$0xff] %v1577
    %1898 = vst [vmem:[#allocation5 + $0x780] sm:$0xff] %v1578
    %1899 = vst [vmem:[#allocation5 + $0x788] sm:$0xff] %v1579
    %1900 = vst [vmem:[#allocation5 + $0x790] sm:$0xff] %v1580
    %1901 = vst [vmem:[#allocation5 + $0x798] sm:$0xff] %v1581
    %1902 = vst [vmem:[#allocation5 + $0x7a0] sm:$0xff] %v1582
    %1903 = vst [vmem:[#allocation5 + $0x7a8] sm:$0xff] %v1583
    %1904 = vst [vmem:[#allocation5 + $0x7b0] sm:$0xff] %v1584
    %1905 = vst [vmem:[#allocation5 + $0x7b8] sm:$0xff] %v1585
    %1906 = vst [vmem:[#allocation5 + $0x7c0] sm:$0xff] %v1586
    %1907 = vst [vmem:[#allocation5 + $0x7c8] sm:$0xff] %v1587
    %1908 = vst [vmem:[#allocation5 + $0x7d0] sm:$0xff] %v1588
    %1909 = vst [vmem:[#allocation5 + $0x7d8] sm:$0xff] %v1589
    %1910 = vst [vmem:[#allocation5 + $0x7e0] sm:$0xff] %v1590
    %1911 = vst [vmem:[#allocation5 + $0x7e8] sm:$0xff] %v1591
    %1912 = vst [vmem:[#allocation5 + $0x7f0] sm:$0xff] %v1592
    %1913 = vst [vmem:[#allocation5 + $0x7f8] sm:$0xff] %v1593
    %1914 = vst [vmem:[#allocation5 + $0x800] sm:$0xff] %v1594
    %1915 = vst [vmem:[#allocation5 + $0x808] sm:$0xff] %v1595
    %1916 = vst [vmem:[#allocation5 + $0x810] sm:$0xff] %v1596
    %1917 = vst [vmem:[#allocation5 + $0x818] sm:$0xff] %v1597
    %1918 = vst [vmem:[#allocation5 + $0x820] sm:$0xff] %v1598
    %1919 = vst [vmem:[#allocation5 + $0x828] sm:$0xff] %v1599
    %1920 = vst [vmem:[#allocation5 + $0x830] sm:$0xff] %v1600
    %1921 = vst [vmem:[#allocation5 + $0x838] sm:$0xff] %v1601
    %1922 = vst [vmem:[#allocation5 + $0x840] sm:$0xff] %v1602
    %1923 = vst [vmem:[#allocation5 + $0x848] sm:$0xff] %v1603
    %1924 = vst [vmem:[#allocation5 + $0x850] sm:$0xff] %v1604
    %1925 = vst [vmem:[#allocation5 + $0x858] sm:$0xff] %v1605
    %1926 = vst [vmem:[#allocation5 + $0x860] sm:$0xff] %v1606
    %1927 = vst [vmem:[#allocation5 + $0x868] sm:$0xff] %v1607
    %1928 = vst [vmem:[#allocation5 + $0x870] sm:$0xff] %v1608
    %1929 = vst [vmem:[#allocation5 + $0x878] sm:$0xff] %v1609
    %1930 = vst [vmem:[#allocation5 + $0x880] sm:$0xff] %v1610
    %1931 = vst [vmem:[#allocation5 + $0x888] sm:$0xff] %v1611
    %1932 = vst [vmem:[#allocation5 + $0x890] sm:$0xff] %v1612
    %1933 = vst [vmem:[#allocation5 + $0x898] sm:$0xff] %v1613
    %1934 = vst [vmem:[#allocation5 + $0x8a0] sm:$0xff] %v1614
    %1935 = vst [vmem:[#allocation5 + $0x8a8] sm:$0xff] %v1615
    %1936 = vst [vmem:[#allocation5 + $0x8b0] sm:$0xff] %v1616
    %1937 = vst [vmem:[#allocation5 + $0x8b8] sm:$0xff] %v1617
    %1938 = vst [vmem:[#allocation5 + $0x8c0] sm:$0xff] %v1618
    %1939 = vst [vmem:[#allocation5 + $0x8c8] sm:$0xff] %v1619
    %1940 = vst [vmem:[#allocation5 + $0x8d0] sm:$0xff] %v1620
    %1941 = vst [vmem:[#allocation5 + $0x8d8] sm:$0xff] %v1621
    %1942 = vst [vmem:[#allocation5 + $0x8e0] sm:$0xff] %v1622
    %1943 = vst [vmem:[#allocation5 + $0x8e8] sm:$0xff] %v1623
    %1944 = vst [vmem:[#allocation5 + $0x8f0] sm:$0xff] %v1624
    %1945 = vst [vmem:[#allocation5 + $0x8f8] sm:$0xff] %v1625
    %1946 = vst [vmem:[#allocation5 + $0x900] sm:$0xff] %v1626
    %1947 = vst [vmem:[#allocation5 + $0x908] sm:$0xff] %v1627
    %1948 = vst [vmem:[#allocation5 + $0x910] sm:$0xff] %v1628
    %1949 = vst [vmem:[#allocation5 + $0x918] sm:$0xff] %v1629
    %1950 = vst [vmem:[#allocation5 + $0x920] sm:$0xff] %v1630
    %1951 = vst [vmem:[#allocation5 + $0x928] sm:$0xff] %v1631
    %1952 = vst [vmem:[#allocation5 + $0x930] sm:$0xff] %v1632
    %1953 = vst [vmem:[#allocation5 + $0x938] sm:$0xff] %v1633
    %1954 = vst [vmem:[#allocation5 + $0x940] sm:$0xff] %v1634
    %1955 = vst [vmem:[#allocation5 + $0x948] sm:$0xff] %v1635
    %1956 = vst [vmem:[#allocation5 + $0x950] sm:$0xff] %v1636
    %1957 = vst [vmem:[#allocation5 + $0x958] sm:$0xff] %v1637
    %1958 = vst [vmem:[#allocation5 + $0x960] sm:$0xff] %v1638
    %1959 = vst [vmem:[#allocation5 + $0x968] sm:$0xff] %v1639
    %1960 = vst [vmem:[#allocation5 + $0x970] sm:$0xff] %v1640
    %1961 = vst [vmem:[#allocation5 + $0x978] sm:$0xff] %v1641
    %1962 = vst [vmem:[#allocation5 + $0x980] sm:$0xff] %v1642
    %1963 = vst [vmem:[#allocation5 + $0x988] sm:$0xff] %v1643
    %1964 = vst [vmem:[#allocation5 + $0x990] sm:$0xff] %v1644
    %1965 = vst [vmem:[#allocation5 + $0x998] sm:$0xff] %v1645
    %1966 = vst [vmem:[#allocation5 + $0x9a0] sm:$0xff] %v1646
    %1967 = vst [vmem:[#allocation5 + $0x9a8] sm:$0xff] %v1647
    %1968 = vst [vmem:[#allocation5 + $0x9b0] sm:$0xff] %v1648
    %1969 = vst [vmem:[#allocation5 + $0x9b8] sm:$0xff] %v1649
    %1970 = vst [vmem:[#allocation5 + $0x9c0] sm:$0xff] %v1650
    %1971 = vst [vmem:[#allocation5 + $0x9c8] sm:$0xff] %v1651
    %1972 = vst [vmem:[#allocation5 + $0x9d0] sm:$0xff] %v1652
    %1973 = vst [vmem:[#allocation5 + $0x9d8] sm:$0xff] %v1653
    %1974 = vst [vmem:[#allocation5 + $0x9e0] sm:$0xff] %v1654
    %1975 = vst [vmem:[#allocation5 + $0x9e8] sm:$0xff] %v1655
    %1976 = vst [vmem:[#allocation5 + $0x9f0] sm:$0xff] %v1656
    %1977 = vst [vmem:[#allocation5 + $0x9f8] sm:$0xff] %v1657
    // Predicated region
    $region10: #{tpu_custom_call.1} parent=1 // pred_check
      _
    $region11: #{tpu_custom_call.1} parent=1 // pred_check_branch
      %1979 = sbr.rel (0) target = $region13
    $region12: #{tpu_custom_call.1} parent=1 // pred_region
      %s1981 = ssub.s32 40960, 40960
      %1982 = vsyncadd [#allocation4], %s1981
      %s1983 = sshll.u32 [#allocation5], 4
      %s1984 = int_to_ptr.vmem [resolvable:$true] %s1983
      %1989 = dma.vmem_to_hbm [thread:$0]  %s1984, 40960, %s1, [#allocation4], 640, 640, 40
    $region13: #{tpu_custom_call.1} parent=1 // pred_fallthru
      _
    // Predicated region
    $region14: #{tpu_custom_call.1} parent=1 // pred_check
      _
    $region15: #{tpu_custom_call.1} parent=1 // pred_check_branch
      %1991 = sbr.rel (0) target = $region17
    $region16: #{tpu_custom_call.1} parent=1 // pred_region
      %1992 = dma.done [#allocation4], 40960
    $region17: #{tpu_custom_call.1} parent=1 // pred_fallthru
      _
    %1993 = vsyncpa [#allocation3], 1
    %1994 = vsyncpa [#allocation4], 1

</llo_original>
